<compile_context>
chip_gen: v5e
topology: v5e:2x2
jax: 0.10.0
libtpu: 0.0.40
codegen_flags: <defaults>
</compile_context>

<pallas_src>
import jax
import jax.numpy as jnp
from jax.experimental import pallas as pl
from jax.experimental.pallas import tpu as pltpu


def _ceil_to(x, m):
    return ((x + m - 1) // m) * m


def _pick_row_tile(h):
    # Largest row tile that divides H while still giving >= 2 grid points per image.
    for t in (64, 32, 16, 8, 4, 2, 1):
        if h % t == 0 and h // t >= 2:
            return t
    return h


def _convblock_kernel(xp_ref, w_ref, scale_ref, bias_ref, o_ref, acc_ref):
    """Fused 3x3 conv (stride 1) + folded BN + LeakyReLU(0.1) for one row tile.

    xp_ref   : (1, H+2, W+2, Cin_p)  spatially padded, channel-padded input (bf16)
    w_ref    : (3, 3*Cin_p, Cout_p)  weights, kw taps merged on the input axis (bf16)
    scale_ref: (1, Cout_p)           folded BN scale (f32)
    bias_ref : (1, Cout_p)           folded BN bias (f32)
    o_ref    : (1, TH, W, Cout_p)    output row tile (f32)
    acc_ref  : (TH*W, Cout_p)        f32 VMEM accumulator scratch
    """
    TH = o_ref.shape[1]
    W = o_ref.shape[2]
    Cout_p = o_ref.shape[3]
    Cin3 = w_ref.shape[1]            # 3 * Cin_p

    row0 = pl.multiple_of(pl.program_id(1) * TH, TH)

    acc_ref[...] = jnp.zeros_like(acc_ref)
    for kh in range(3):              # unrolled: 3 fat MXU contractions per tile
        rows = xp_ref[0, pl.ds(row0 + kh, TH)]               # (TH, W+2, Cin_p)
        # Merge the three kw taps along the channel (lane) axis; offsets are
        # multiples of 128, so the concat is a clean lane-aligned copy.
        patch = jnp.concatenate(
            [rows[:, 0:W], rows[:, 1:W + 1], rows[:, 2:W + 2]], axis=-1)
        # (TH, W, 3*Cin_p) -> (TH*W, 3*Cin_p) is layout-preserving here.
        acc_ref[...] += jnp.dot(patch.reshape(TH * W, Cin3), w_ref[kh],
                                preferred_element_type=jnp.float32)

    # Folded BatchNorm (inference) + LeakyReLU(0.1), f32 on the VPU.
    y = acc_ref[...] * scale_ref[0] + bias_ref[0]
    y = jnp.where(y > 0, y, 0.1 * y)
    o_ref[0] = y.reshape(TH, W, Cout_p).astype(o_ref.dtype)


def conv_block_forward_nhwc(x_nhwc, w_hwio, gamma, beta, running_mean,
                            running_var, eps=1e-5):
    """NHWC in / NHWC out. x_nhwc: (N, H, W, Cin) f32 -> (N, H, W, Cout) f32."""
    N, H, W, Cin = x_nhwc.shape
    KH, KW, _, Cout = w_hwio.shape
    assert (KH, KW) == (3, 3)

    Cin_p = _ceil_to(Cin, 128)
    Cout_p = _ceil_to(Cout, 128)
    TH = _pick_row_tile(H)

    # One fused pad: spatial halo (pad=1) + channel lane-padding; bf16 MXU feed.
    x_pad = jnp.pad(
        x_nhwc, ((0, 0), (1, 1), (1, 1), (0, Cin_p - Cin))).astype(jnp.bfloat16)

    # Weights: HWIO, pad channels, merge the kw taps onto the contraction axis.
    w_p = jnp.pad(w_hwio, ((0, 0), (0, 0), (0, Cin_p - Cin), (0, Cout_p - Cout)))
    w_merged = w_p.reshape(3, 3 * Cin_p, Cout_p).astype(jnp.bfloat16)

    # Fold BN (eval mode) into per-channel scale / bias (kept f32).
    inv = gamma * jax.lax.rsqrt(running_var + eps)
    scale = jnp.pad(inv, (0, Cout_p - Cout)).reshape(1, Cout_p).astype(jnp.float32)
    bias = jnp.pad(beta - running_mean * inv,
                   (0, Cout_p - Cout)).reshape(1, Cout_p).astype(jnp.float32)

    # VMEM budget: double-buffered blocks + scratch + headroom.
    est = (2 * (H + 2) * (W + 2) * Cin_p * 2      # input block x2, bf16
           + 2 * TH * W * Cout_p * 4              # output block x2, f32
           + 2 * 3 * 3 * Cin_p * Cout_p * 2       # weights x2, bf16
           + TH * W * Cout_p * 4                  # accumulator scratch, f32
           + (2 << 20))
    vmem_limit = int(min(max(est, 32 * 1024 * 1024), 120 * 1024 * 1024))

    out = pl.pallas_call(
        _convblock_kernel,
        out_shape=jax.ShapeDtypeStruct((N, H, W, Cout_p), jnp.float32),
        grid_spec=pltpu.PrefetchScalarGridSpec(
            num_scalar_prefetch=0,
            grid=(N, H // TH),
            in_specs=[
                pl.BlockSpec((1, H + 2, W + 2, Cin_p), lambda n, h: (n, 0, 0, 0)),
                pl.BlockSpec((3, 3 * Cin_p, Cout_p), lambda n, h: (0, 0, 0)),
                pl.BlockSpec((1, Cout_p), lambda n, h: (0, 0)),
                pl.BlockSpec((1, Cout_p), lambda n, h: (0, 0)),
            ],
            out_specs=pl.BlockSpec((1, TH, W, Cout_p), lambda n, h: (n, h, 0, 0)),
            scratch_shapes=[pltpu.VMEM((TH * W, Cout_p), jnp.float32)],
        ),
        compiler_params=pltpu.CompilerParams(
            dimension_semantics=("parallel", "parallel"),
            vmem_limit_bytes=vmem_limit),
    )(x_pad, w_merged, scale, bias)

    return out[..., :Cout]


@jax.jit
def conv_block_forward(x_nchw, w_hwio, gamma, beta, running_mean, running_var,
                       eps=1e-5):
    """PyTorch-parity wrapper: NCHW in / NCHW out (prefer the NHWC entry point)."""
    x_nhwc = jnp.transpose(x_nchw, (0, 2, 3, 1))
    y = conv_block_forward_nhwc(x_nhwc, w_hwio, gamma, beta, running_mean,
                                running_var, eps)
    return jnp.transpose(y, (0, 3, 1, 2))


def _reference(x_nchw, w_hwio, gamma, beta, running_mean, running_var, eps=1e-5):
    """Pure-JAX f32 reference for correctness checking."""
    w_oihw = jnp.transpose(w_hwio, (3, 2, 0, 1))
    y = jax.lax.conv_general_dilated(
        x_nchw, w_oihw, window_strides=(1, 1), padding=((1, 1), (1, 1)),
        dimension_numbers=("NCHW", "OIHW", "NCHW"))
    s = (gamma / jnp.sqrt(running_var + eps)).reshape(1, -1, 1, 1)
    b = (beta - running_mean * gamma / jnp.sqrt(running_var + eps)).reshape(1, -1, 1, 1)
    y = y * s + b
    return jnp.where(y > 0, y, 0.1 * y)


if __name__ == "__main__":
    key = jax.random.PRNGKey(0)
    k_x, k_w, k_g, k_b, k_m, k_v = jax.random.split(key, 6)

    N, Cin, H, W = 2, 4, 16, 16
    Cout, K = 8, 3

    x = jax.random.normal(k_x, (N, Cin, H, W), jnp.float32)
    # Deterministic synthetic parameters (shapes from nn.Conv2d / nn.BatchNorm2d).
    w_hwio = 0.1 * jax.random.normal(k_w, (K, K, Cin, Cout), jnp.float32)
    gamma = 1.0 + 0.1 * jax.random.normal(k_g, (Cout,), jnp.float32)
    beta = 0.1 * jax.random.normal(k_b, (Cout,), jnp.float32)
    running_mean = 0.1 * jax.random.normal(k_m, (Cout,), jnp.float32)
    running_var = jnp.abs(jax.random.normal(k_v, (Cout,), jnp.float32)) + 0.5

    out = conv_block_forward(x, w_hwio, gamma, beta, running_mean, running_var)
    out = jax.block_until_ready(out)

    ref = _reference(x, w_hwio, gamma, beta, running_mean, running_var)
    assert out.shape == (N, Cout, H, W)
    # bf16 MXU feed with f32 accumulation -> slightly looser tolerance than pure f32.
    assert jnp.allclose(out, ref, atol=5e-2, rtol=5e-2), \
        float(jnp.max(jnp.abs(out - ref)))

    print("KERNEL_OK")
</pallas_src>

<mosaic_0001>
module attributes {stable_mosaic.version = 11 : i64} {
  func.func @_convblock_kernel(%arg0: i32, %arg1: i32, %arg2: memref<1x18x18x128xbf16, #tpu.memory_space<vmem>>, %arg3: memref<3x384x128xbf16, #tpu.memory_space<vmem>>, %arg4: memref<1x128xf32, #tpu.memory_space<vmem>>, %arg5: memref<1x128xf32, #tpu.memory_space<vmem>>, %arg6: memref<1x8x16x128xf32, #tpu.memory_space<vmem>>, %arg7: memref<128x128xf32, #tpu.memory_space<vmem>>) attributes {dimension_semantics = [#tpu.dimension_semantics<parallel>, #tpu.dimension_semantics<parallel>], iteration_bounds = array<i64: 2, 2>, scalar_prefetch = 0 : i64, scratch_operands = 1 : i64, tpu.core_type = #tpu.core_type<tc>, window_params = [{transform_indices = @transform_0, window_bounds = array<i64: 1, 18, 18, 128>}, {pipeline_mode = #tpu.pipeline_mode<synchronous>, transform_indices = @transform_1, window_bounds = array<i64: 3, 384, 128>}, {pipeline_mode = #tpu.pipeline_mode<synchronous>, transform_indices = @transform_2, window_bounds = array<i64: 1, 128>}, {pipeline_mode = #tpu.pipeline_mode<synchronous>, transform_indices = @transform_3, window_bounds = array<i64: 1, 128>}, {transform_indices = @transform_4, window_bounds = array<i64: 1, 8, 16, 128>}]} {
    %c8_i32 = arith.constant 8 : i32
    %0 = arith.muli %arg1, %c8_i32 : i32
    %1 = tpu.assume_multiple %0, 8 : i32
    %cst = arith.constant 0.000000e+00 : f32
    %2 = vector.broadcast %cst : f32 to vector<128x128xf32>
    %c0 = arith.constant 0 : index
    %c0_0 = arith.constant 0 : index
    %3 = vector.load %arg7[%c0, %c0_0] : memref<128x128xf32, #tpu.memory_space<vmem>>, vector<128x128xf32>
    tpu.vector_store %arg7[%c0, %c0_0], %2 {strides = array<i32>} : memref<128x128xf32, #tpu.memory_space<vmem>>, vector<128x128xf32>,
    %c0_i32 = arith.constant 0 : i32
    %4 = arith.addi %1, %c0_i32 : i32
    %c0_1 = arith.constant 0 : index
    %5 = arith.index_cast %4 : i32 to index
    %c0_2 = arith.constant 0 : index
    %c0_3 = arith.constant 0 : index
    %6 = vector.load %arg2[%c0_1, %5, %c0_2, %c0_3] : memref<1x18x18x128xbf16, #tpu.memory_space<vmem>>, vector<1x8x18x128xbf16>
    %7 = vector.shape_cast %6 : vector<1x8x18x128xbf16> to vector<8x18x128xbf16>
    %8 = vector.extract_strided_slice %7 {offsets = [0, 0, 0], sizes = [8, 16, 128], strides = [1, 1, 1]} : vector<8x18x128xbf16> to vector<8x16x128xbf16>
    %9 = vector.extract_strided_slice %7 {offsets = [0, 1, 0], sizes = [8, 16, 128], strides = [1, 1, 1]} : vector<8x18x128xbf16> to vector<8x16x128xbf16>
    %10 = vector.extract_strided_slice %7 {offsets = [0, 2, 0], sizes = [8, 16, 128], strides = [1, 1, 1]} : vector<8x18x128xbf16> to vector<8x16x128xbf16>
    %11 = tpu.concatenate %8, %9, %10 in 2 : vector<8x16x128xbf16>, vector<8x16x128xbf16>, vector<8x16x128xbf16> -> vector<8x16x384xbf16>
    %c0_4 = arith.constant 0 : index
    %c0_5 = arith.constant 0 : index
    %12 = vector.load %arg7[%c0_4, %c0_5] : memref<128x128xf32, #tpu.memory_space<vmem>>, vector<128x128xf32>
    %13 = vector.shape_cast %11 : vector<8x16x384xbf16> to vector<128x384xbf16>
    %c0_6 = arith.constant 0 : index
    %c0_7 = arith.constant 0 : index
    %c0_8 = arith.constant 0 : index
    %14 = vector.load %arg3[%c0_6, %c0_7, %c0_8] : memref<3x384x128xbf16, #tpu.memory_space<vmem>>, vector<1x384x128xbf16>
    %15 = vector.shape_cast %14 : vector<1x384x128xbf16> to vector<384x128xbf16>
    %cst_9 = arith.constant dense<0.000000e+00> : vector<128x128xf32>
    %16 = tpu.matmul %13, %15, %cst_9 {dimension_numbers = #tpu.dot_dimension_numbers<[1], [0], [0], [1], [0, 0, 1, 1], [], []>} : vector<128x384xbf16>, vector<384x128xbf16>, vector<128x128xf32> -> vector<128x128xf32>
    %17 = arith.addf %12, %16 : vector<128x128xf32>
    %c0_10 = arith.constant 0 : index
    %c0_11 = arith.constant 0 : index
    %18 = vector.load %arg7[%c0_10, %c0_11] : memref<128x128xf32, #tpu.memory_space<vmem>>, vector<128x128xf32>
    tpu.vector_store %arg7[%c0_10, %c0_11], %17 {strides = array<i32>} : memref<128x128xf32, #tpu.memory_space<vmem>>, vector<128x128xf32>,
    %c1_i32 = arith.constant 1 : i32
    %19 = arith.addi %1, %c1_i32 : i32
    %c0_12 = arith.constant 0 : index
    %20 = arith.index_cast %19 : i32 to index
    %c0_13 = arith.constant 0 : index
    %c0_14 = arith.constant 0 : index
    %21 = vector.load %arg2[%c0_12, %20, %c0_13, %c0_14] : memref<1x18x18x128xbf16, #tpu.memory_space<vmem>>, vector<1x8x18x128xbf16>
    %22 = vector.shape_cast %21 : vector<1x8x18x128xbf16> to vector<8x18x128xbf16>
    %23 = vector.extract_strided_slice %22 {offsets = [0, 0, 0], sizes = [8, 16, 128], strides = [1, 1, 1]} : vector<8x18x128xbf16> to vector<8x16x128xbf16>
    %24 = vector.extract_strided_slice %22 {offsets = [0, 1, 0], sizes = [8, 16, 128], strides = [1, 1, 1]} : vector<8x18x128xbf16> to vector<8x16x128xbf16>
    %25 = vector.extract_strided_slice %22 {offsets = [0, 2, 0], sizes = [8, 16, 128], strides = [1, 1, 1]} : vector<8x18x128xbf16> to vector<8x16x128xbf16>
    %26 = tpu.concatenate %23, %24, %25 in 2 : vector<8x16x128xbf16>, vector<8x16x128xbf16>, vector<8x16x128xbf16> -> vector<8x16x384xbf16>
    %c0_15 = arith.constant 0 : index
    %c0_16 = arith.constant 0 : index
    %27 = vector.load %arg7[%c0_15, %c0_16] : memref<128x128xf32, #tpu.memory_space<vmem>>, vector<128x128xf32>
    %28 = vector.shape_cast %26 : vector<8x16x384xbf16> to vector<128x384xbf16>
    %c1 = arith.constant 1 : index
    %c0_17 = arith.constant 0 : index
    %c0_18 = arith.constant 0 : index
    %29 = vector.load %arg3[%c1, %c0_17, %c0_18] : memref<3x384x128xbf16, #tpu.memory_space<vmem>>, vector<1x384x128xbf16>
    %30 = vector.shape_cast %29 : vector<1x384x128xbf16> to vector<384x128xbf16>
    %cst_19 = arith.constant dense<0.000000e+00> : vector<128x128xf32>
    %31 = tpu.matmul %28, %30, %cst_19 {dimension_numbers = #tpu.dot_dimension_numbers<[1], [0], [0], [1], [0, 0, 1, 1], [], []>} : vector<128x384xbf16>, vector<384x128xbf16>, vector<128x128xf32> -> vector<128x128xf32>
    %32 = arith.addf %27, %31 : vector<128x128xf32>
    %c0_20 = arith.constant 0 : index
    %c0_21 = arith.constant 0 : index
    %33 = vector.load %arg7[%c0_20, %c0_21] : memref<128x128xf32, #tpu.memory_space<vmem>>, vector<128x128xf32>
    tpu.vector_store %arg7[%c0_20, %c0_21], %32 {strides = array<i32>} : memref<128x128xf32, #tpu.memory_space<vmem>>, vector<128x128xf32>,
    %c2_i32 = arith.constant 2 : i32
    %34 = arith.addi %1, %c2_i32 : i32
    %c0_22 = arith.constant 0 : index
    %35 = arith.index_cast %34 : i32 to index
    %c0_23 = arith.constant 0 : index
    %c0_24 = arith.constant 0 : index
    %36 = vector.load %arg2[%c0_22, %35, %c0_23, %c0_24] : memref<1x18x18x128xbf16, #tpu.memory_space<vmem>>, vector<1x8x18x128xbf16>
    %37 = vector.shape_cast %36 : vector<1x8x18x128xbf16> to vector<8x18x128xbf16>
    %38 = vector.extract_strided_slice %37 {offsets = [0, 0, 0], sizes = [8, 16, 128], strides = [1, 1, 1]} : vector<8x18x128xbf16> to vector<8x16x128xbf16>
    %39 = vector.extract_strided_slice %37 {offsets = [0, 1, 0], sizes = [8, 16, 128], strides = [1, 1, 1]} : vector<8x18x128xbf16> to vector<8x16x128xbf16>
    %40 = vector.extract_strided_slice %37 {offsets = [0, 2, 0], sizes = [8, 16, 128], strides = [1, 1, 1]} : vector<8x18x128xbf16> to vector<8x16x128xbf16>
    %41 = tpu.concatenate %38, %39, %40 in 2 : vector<8x16x128xbf16>, vector<8x16x128xbf16>, vector<8x16x128xbf16> -> vector<8x16x384xbf16>
    %c0_25 = arith.constant 0 : index
    %c0_26 = arith.constant 0 : index
    %42 = vector.load %arg7[%c0_25, %c0_26] : memref<128x128xf32, #tpu.memory_space<vmem>>, vector<128x128xf32>
    %43 = vector.shape_cast %41 : vector<8x16x384xbf16> to vector<128x384xbf16>
    %c2 = arith.constant 2 : index
    %c0_27 = arith.constant 0 : index
    %c0_28 = arith.constant 0 : index
    %44 = vector.load %arg3[%c2, %c0_27, %c0_28] : memref<3x384x128xbf16, #tpu.memory_space<vmem>>, vector<1x384x128xbf16>
    %45 = vector.shape_cast %44 : vector<1x384x128xbf16> to vector<384x128xbf16>
    %cst_29 = arith.constant dense<0.000000e+00> : vector<128x128xf32>
    %46 = tpu.matmul %43, %45, %cst_29 {dimension_numbers = #tpu.dot_dimension_numbers<[1], [0], [0], [1], [0, 0, 1, 1], [], []>} : vector<128x384xbf16>, vector<384x128xbf16>, vector<128x128xf32> -> vector<128x128xf32>
    %47 = arith.addf %42, %46 : vector<128x128xf32>
    %c0_30 = arith.constant 0 : index
    %c0_31 = arith.constant 0 : index
    %48 = vector.load %arg7[%c0_30, %c0_31] : memref<128x128xf32, #tpu.memory_space<vmem>>, vector<128x128xf32>
    tpu.vector_store %arg7[%c0_30, %c0_31], %47 {strides = array<i32>} : memref<128x128xf32, #tpu.memory_space<vmem>>, vector<128x128xf32>,
    %c0_32 = arith.constant 0 : index
    %c0_33 = arith.constant 0 : index
    %49 = vector.load %arg7[%c0_32, %c0_33] : memref<128x128xf32, #tpu.memory_space<vmem>>, vector<128x128xf32>
    %c0_34 = arith.constant 0 : index
    %c0_35 = arith.constant 0 : index
    %50 = vector.load %arg4[%c0_34, %c0_35] : memref<1x128xf32, #tpu.memory_space<vmem>>, vector<1x128xf32>
    %51 = vector.shape_cast %50 : vector<1x128xf32> to vector<128xf32>
    %52 = vector.shape_cast %51 : vector<128xf32> to vector<1x128xf32>
    %53 = vector.broadcast %52 : vector<1x128xf32> to vector<128x128xf32>
    %54 = arith.mulf %49, %53 : vector<128x128xf32>
    %c0_36 = arith.constant 0 : index
    %c0_37 = arith.constant 0 : index
    %55 = vector.load %arg5[%c0_36, %c0_37] : memref<1x128xf32, #tpu.memory_space<vmem>>, vector<1x128xf32>
    %56 = vector.shape_cast %55 : vector<1x128xf32> to vector<128xf32>
    %57 = vector.shape_cast %56 : vector<128xf32> to vector<1x128xf32>
    %58 = vector.broadcast %57 : vector<1x128xf32> to vector<128x128xf32>
    %59 = arith.addf %54, %58 : vector<128x128xf32>
    %cst_38 = arith.constant 0.000000e+00 : f32
    %60 = vector.broadcast %cst_38 : f32 to vector<128x128xf32>
    %61 = arith.cmpf ogt, %59, %60 : vector<128x128xf32>
    %cst_39 = arith.constant 1.000000e-01 : f32
    %62 = vector.broadcast %cst_39 : f32 to vector<128x128xf32>
    %63 = arith.mulf %62, %59 : vector<128x128xf32>
    %64 = arith.select %61, %59, %63 : vector<128x128xi1>, vector<128x128xf32>
    %65 = vector.shape_cast %64 : vector<128x128xf32> to vector<8x16x128xf32>
    %c0_40 = arith.constant 0 : index
    %c0_41 = arith.constant 0 : index
    %c0_42 = arith.constant 0 : index
    %c0_43 = arith.constant 0 : index
    %66 = vector.load %arg6[%c0_40, %c0_41, %c0_42, %c0_43] : memref<1x8x16x128xf32, #tpu.memory_space<vmem>>, vector<1x8x16x128xf32>
    %67 = vector.shape_cast %66 : vector<1x8x16x128xf32> to vector<8x16x128xf32>
    %68 = vector.shape_cast %65 : vector<8x16x128xf32> to vector<1x8x16x128xf32>
    tpu.vector_store %arg6[%c0_40, %c0_41, %c0_42, %c0_43], %68 {strides = array<i32>} : memref<1x8x16x128xf32, #tpu.memory_space<vmem>>, vector<1x8x16x128xf32>,
    return
  }
  func.func @transform_0(%arg0: i32, %arg1: i32) -> (i32, i32, i32, i32) {
    %c0_i32 = arith.constant 0 : i32
    %c0_i32_0 = arith.constant 0 : i32
    %c0_i32_1 = arith.constant 0 : i32
    %c0_i32_2 = arith.constant 0 : i32
    return %arg0, %c0_i32, %c0_i32_0, %c0_i32_1 : i32, i32, i32, i32
  }
  func.func @transform_1(%arg0: i32, %arg1: i32) -> (i32, i32, i32) {
    %c0_i32 = arith.constant 0 : i32
    %c0_i32_0 = arith.constant 0 : i32
    %c0_i32_1 = arith.constant 0 : i32
    %c0_i32_2 = arith.constant 0 : i32
    return %c0_i32, %c0_i32_0, %c0_i32_1 : i32, i32, i32
  }
  func.func @transform_2(%arg0: i32, %arg1: i32) -> (i32, i32) {
    %c0_i32 = arith.constant 0 : i32
    %c0_i32_0 = arith.constant 0 : i32
    %c0_i32_1 = arith.constant 0 : i32
    return %c0_i32, %c0_i32_0 : i32, i32
  }
  func.func @transform_3(%arg0: i32, %arg1: i32) -> (i32, i32) {
    %c0_i32 = arith.constant 0 : i32
    %c0_i32_0 = arith.constant 0 : i32
    %c0_i32_1 = arith.constant 0 : i32
    return %c0_i32, %c0_i32_0 : i32, i32
  }
  func.func @transform_4(%arg0: i32, %arg1: i32) -> (i32, i32, i32, i32) {
    %c0_i32 = arith.constant 0 : i32
    %c0_i32_0 = arith.constant 0 : i32
    %c0_i32_1 = arith.constant 0 : i32
    return %arg0, %arg1, %c0_i32, %c0_i32_0 : i32, i32, i32, i32
  }
}

</mosaic_0001>

<llo_original>
// kernel: conv_block_forward.1
$region0: #{conv_block_forward.1}
  #allocation0 [shape = 'u32[]', space=smem, size = 0x4, offset = 0x4, fixed_abs, tag = 'smem constant byte address 0x4 - core index']
  #allocation1 [shape = 'u32[72,128]{1,0:T(1,128)}', space=vmem, size = 0x9000, scoped, tag = 'internal scratch']
  #allocation2 [shape = 'f32[128,128]{1,0:T(8,128)}', space=vmem, size = 0x10000, scoped, tag = 'scratch operand']
  %s0 = inlined_call_operand.vmem [shape: bf16[2,18,18,128], index: 0, kind: input, shape index: {}]
  %s1 = inlined_call_operand.vmem [shape: bf16[3,384,128], index: 1, kind: input, shape index: {}]
  %s2 = inlined_call_operand.vmem [shape: f32[1,128], index: 2, kind: input, shape index: {}]
  %s3 = inlined_call_operand.vmem [shape: f32[1,128], index: 3, kind: input, shape index: {}]
  %s4 = inlined_call_operand.vmem [shape: f32[2,16,16,128], index: 4, kind: output, shape index: {}]
  %s5 = sld [smem:[#allocation0]]
  $region49: #{conv_block_forward.1} parent=0
    _
  %s7 = ssub.s32 1, %s5
  %s8 = scalar_select 0, %s7, %s5
  loop: start=0, step=1, limit=6
  $region2: #{conv_block_forward.1} parent=0 // loop_pre_header
    _
  $region3: #{conv_block_forward.1} parent=0 // loop_header
    %s10 = sphi 0, %s14
    %p11 = scmp.ge.s32.totalorder %s10, 6
    %s17 = sphi 0, %s29
    %s18 = sphi 0, %s25
    %s19 = sphi 0, %s17
    %s20 = sphi 0, %s18
    %s21 = sphi 0, %s19
    %s22 = sphi 0, %s20
    %s32 = sphi 0, %s34
    %s35 = sphi 0, %s32
    %s36 = sphi 0, %s35
    %s52 = sphi 0, %s36
    %s56 = sphi 0, %s56
    %s58 = sphi 0, %s56
    %s59 = sphi 0, %s58
    %s73 = sphi 0, %s59
    %s77 = sphi 0, %s77
    %s79 = sphi 0, %s77
    %s80 = sphi 0, %s79
    %s94 = sphi 0, %s80
    %s98 = sphi 0, %s98
    %s100 = sphi 0, %s98
    %s101 = sphi 0, %s100
    %s115 = sphi 0, %s101
    %s123 = sphi 0, %s125
    %s126 = sphi 0, %s123
    %s127 = sphi 0, %s126
    %s143 = sphi 0, %s127
  $region4: #{conv_block_forward.1} parent=0 // loop_header_branch
    %13 = sbr.rel (%p11) target = $region8
  $region5: #{conv_block_forward.1} parent=0 // loop_body
    %s15 = ssub.s32 %s10, 1
    %s16 = ssub.s32 %s10, 2
    %s23 = sadd.s32 1, %s18
    %p24 = scmp.ge.s32.totalorder %s23, 2
    %s25 = scalar_select %p24, 0, %s23
    %s26 = sadd.s32 1, %s17
    %s27 = scalar_select %p24, %s26, %s17
    %p28 = scmp.ge.s32.totalorder %s27, 2
    %s29 = scalar_select %p28, 0, %s27
    %s30 = ssub.s32 %s17, %s29
    %p31 = scmp.eq.s32.totalorder %s30, 0
    %s33 = sadd.s32 %s32, 1
    %s34 = scalar_select %p31, %s32, %s33
    %p37 = pneg %p31
    %p38 = scmp.eq.s32.totalorder %s10, 3
    %p39 = por %p37, %p38
    %p40 = scmp.ne.s32.totalorder %s32, %s35
    %p41 = scmp.eq.s32.totalorder %s10, 0
    %p42 = por %p40, %p41
    %p43 = scmp.ne.s32.totalorder %s32, %s35
    %p44 = scmp.eq.s32.totalorder %s15, 3
    %p45 = por %p43, %p44
    %p46 = scmp.ne.s32.totalorder %s35, %s36
    %p47 = scmp.eq.s32.totalorder %s15, 0
    %p48 = por %p46, %p47
    %p49 = scmp.ne.s32.totalorder %s35, %s36
    %p50 = scmp.eq.s32.totalorder %s16, 3
    %p51 = por %p49, %p50
    %p53 = scmp.ne.s32.totalorder %s36, %s52
    %p54 = scmp.eq.s32.totalorder %s16, 0
    %p55 = por %p53, %p54
    %s57 = sadd.s32 %s56, 1
    %p60 = scmp.eq.s32.totalorder %s10, 3
    %p61 = scmp.ne.s32.totalorder %s56, %s58
    %p62 = scmp.eq.s32.totalorder %s10, 0
    %p63 = por %p61, %p62
    %p64 = scmp.ne.s32.totalorder %s56, %s58
    %p65 = scmp.eq.s32.totalorder %s15, 3
    %p66 = por %p64, %p65
    %p67 = scmp.ne.s32.totalorder %s58, %s59
    %p68 = scmp.eq.s32.totalorder %s15, 0
    %p69 = por %p67, %p68
    %p70 = scmp.ne.s32.totalorder %s58, %s59
    %p71 = scmp.eq.s32.totalorder %s16, 3
    %p72 = por %p70, %p71
    %p74 = scmp.ne.s32.totalorder %s59, %s73
    %p75 = scmp.eq.s32.totalorder %s16, 0
    %p76 = por %p74, %p75
    %s78 = sadd.s32 %s77, 1
    %p81 = scmp.eq.s32.totalorder %s10, 3
    %p82 = scmp.ne.s32.totalorder %s77, %s79
    %p83 = scmp.eq.s32.totalorder %s10, 0
    %p84 = por %p82, %p83
    %p85 = scmp.ne.s32.totalorder %s77, %s79
    %p86 = scmp.eq.s32.totalorder %s15, 3
    %p87 = por %p85, %p86
    %p88 = scmp.ne.s32.totalorder %s79, %s80
    %p89 = scmp.eq.s32.totalorder %s15, 0
    %p90 = por %p88, %p89
    %p91 = scmp.ne.s32.totalorder %s79, %s80
    %p92 = scmp.eq.s32.totalorder %s16, 3
    %p93 = por %p91, %p92
    %p95 = scmp.ne.s32.totalorder %s80, %s94
    %p96 = scmp.eq.s32.totalorder %s16, 0
    %p97 = por %p95, %p96
    %s99 = sadd.s32 %s98, 1
    %p102 = scmp.eq.s32.totalorder %s10, 3
    %p103 = scmp.ne.s32.totalorder %s98, %s100
    %p104 = scmp.eq.s32.totalorder %s10, 0
    %p105 = por %p103, %p104
    %p106 = scmp.ne.s32.totalorder %s98, %s100
    %p107 = scmp.eq.s32.totalorder %s15, 3
    %p108 = por %p106, %p107
    %p109 = scmp.ne.s32.totalorder %s100, %s101
    %p110 = scmp.eq.s32.totalorder %s15, 0
    %p111 = por %p109, %p110
    %p112 = scmp.ne.s32.totalorder %s100, %s101
    %p113 = scmp.eq.s32.totalorder %s16, 3
    %p114 = por %p112, %p113
    %p116 = scmp.ne.s32.totalorder %s101, %s115
    %p117 = scmp.eq.s32.totalorder %s16, 0
    %p118 = por %p116, %p117
    %s119 = ssub.s32 %s17, %s29
    %s120 = ssub.s32 %s18, %s25
    %s121 = sor.u32 %s119, %s120
    %p122 = scmp.eq.s32.totalorder %s121, 0
    %s124 = sadd.s32 %s123, 1
    %s125 = scalar_select %p122, %s123, %s124
    %p128 = pneg %p122
    %p129 = scmp.eq.s32.totalorder %s10, 3
    %p130 = por %p128, %p129
    %p131 = scmp.ne.s32.totalorder %s123, %s126
    %p132 = scmp.eq.s32.totalorder %s10, 0
    %p133 = por %p131, %p132
    %p134 = scmp.ne.s32.totalorder %s123, %s126
    %p135 = scmp.eq.s32.totalorder %s15, 3
    %p136 = por %p134, %p135
    %p137 = scmp.ne.s32.totalorder %s126, %s127
    %p138 = scmp.eq.s32.totalorder %s15, 0
    %p139 = por %p137, %p138
    %p140 = scmp.ne.s32.totalorder %s126, %s127
    %p141 = scmp.eq.s32.totalorder %s16, 3
    %p142 = por %p140, %p141
    %p144 = scmp.ne.s32.totalorder %s127, %s143
    %p145 = scmp.eq.s32.totalorder %s16, 0
    %p146 = por %p144, %p145
    %p147 = scmp.le.s32.totalorder 1, %s10
    %p148 = scmp.lt.s32.totalorder %s10, 5
    %p149 = pnand %p147, %p148
    %p150 = pneg %p149
    // Predicated region
    $region9: #{conv_block_forward.1} parent=5 // pred_check
      _
    $region10: #{conv_block_forward.1} parent=5 // pred_check_branch
      %152 = sbr.rel (%p149) target = $region12
    $region11: #{conv_block_forward.1} parent=5 // pred_region
      %s153 = ssub.s32 %s10, 1
      // Predicated region
      $region13: #{conv_block_forward.1} parent=11 // pred_check
        %p154 = pneg %p69
      $region14: #{conv_block_forward.1} parent=11 // pred_check_branch
        %156 = sbr.rel (%p154) target = $region16
      $region15: #{conv_block_forward.1} parent=11 // pred_region
        _
      $region16: #{conv_block_forward.1} parent=11 // pred_fallthru
        _
      // Predicated region
      $region17: #{conv_block_forward.1} parent=11 // pred_check
        %p157 = pneg %p90
      $region18: #{conv_block_forward.1} parent=11 // pred_check_branch
        %159 = sbr.rel (%p157) target = $region20
      $region19: #{conv_block_forward.1} parent=11 // pred_region
        _
      $region20: #{conv_block_forward.1} parent=11 // pred_fallthru
        _
      // Predicated region
      $region21: #{conv_block_forward.1} parent=11 // pred_check
        %p160 = pneg %p111
      $region22: #{conv_block_forward.1} parent=11 // pred_check_branch
        %162 = sbr.rel (%p160) target = $region24
      $region23: #{conv_block_forward.1} parent=11 // pred_region
        _
      $region24: #{conv_block_forward.1} parent=11 // pred_fallthru
        _
    $region12: #{conv_block_forward.1} parent=5 // pred_fallthru
      _
    %p163 = scmp.lt.s32.totalorder %s10, 4
    // Predicated region
    $region25: #{conv_block_forward.1} parent=5 // pred_check
      %p164 = pneg %p163
    $region26: #{conv_block_forward.1} parent=5 // pred_check_branch
      %166 = sbr.rel (%p164) target = $region28
    $region27: #{conv_block_forward.1} parent=5 // pred_region
      // Predicated region
      $region29: #{conv_block_forward.1} parent=27 // pred_check
        %p167 = pneg %p42
      $region30: #{conv_block_forward.1} parent=27 // pred_check_branch
        %169 = sbr.rel (%p167) target = $region32
      $region31: #{conv_block_forward.1} parent=27 // pred_region
        %p170 = scmp.lt.s32.totalorder %s17, 1
        %s171 = scalar_select %p170, %s17, 1
        %s172 = smul.addr %s171, 54
        %s173 = smul.addr %s172, 4
        %s174 = scalar_lea.vmem %s0, %s173
      $region32: #{conv_block_forward.1} parent=27 // pred_fallthru
        _
    $region28: #{conv_block_forward.1} parent=5 // pred_fallthru
      _
    %p175 = scmp.le.s32.totalorder 1, %s10
    %p176 = scmp.lt.s32.totalorder %s10, 5
    %p177 = pnand %p175, %p176
    %p178 = pneg %p177
    // Predicated region
    $region33: #{conv_block_forward.1} parent=5 // pred_check
      _
    $region34: #{conv_block_forward.1} parent=5 // pred_check_branch
      %180 = sbr.rel (%p177) target = $region36
    $region35: #{conv_block_forward.1} parent=5 // pred_region
      %s181 = ssub.s32 %s10, 1
      %p182 = scmp.lt.s32.totalorder %s19, 1
      %s183 = scalar_select %p182, %s19, 1
      %s184 = smul.addr %s183, 54
      %s185 = smul.addr %s184, 4
      %s186 = scalar_lea.vmem %s0, %s185
      %p187 = pneg %p48
      %p188 = pneg %p45
      %p189 = pneg %p69
      %p190 = pneg %p66
      %p191 = pneg %p90
      %p192 = pneg %p87
      %p193 = pneg %p111
      %p194 = pneg %p108
      %p195 = pneg %p139
      %p196 = pneg %p136
      %s197 = smul.u32 8, %s20
      %p198 = scmp.lt.s32.totalorder %s19, 1
      %s199 = scalar_select %p198, %s19, 1
      %p200 = scmp.lt.s32.totalorder %s197, 15
      %s201 = scalar_select %p200, %s197, 15
      %s202 = smul.addr %s201, 2
      %s203 = smul.addr %s199, 32
      %s204 = sadd.s32 %s202, %s203
      %s205 = smul.addr %s204, 8
      %s206 = scalar_lea.vmem %s4, %s205
      %p207 = scmp.lt.s32.totalorder %s19, 1
      %s208 = scalar_select %p207, %s19, 1
      %s209 = smul.addr %s208, 54
      %s210 = smul.addr %s209, 4
      %s211 = scalar_lea.vmem %s0, %s210
      %s212 = smul.u32 8, %s20
      %p213 = scmp.lt.s32.totalorder %s19, 1
      %s214 = scalar_select %p213, %s19, 1
      %p215 = scmp.lt.s32.totalorder %s212, 15
      %s216 = scalar_select %p215, %s212, 15
      %s217 = smul.addr %s216, 2
      %s218 = smul.addr %s214, 32
      %s219 = sadd.s32 %s217, %s218
      %s220 = smul.addr %s219, 8
      %s221 = scalar_lea.vmem %s4, %s220
      %s222 = smul.u32 8, %s20
      %s223 = smul.u32 %s20, 8
      %224 = vst [vmem:[#allocation2] sm:$0xff] 0.0
      %225 = vst [vmem:[#allocation2 + $0x8] sm:$0xff] 0.0
      %226 = vst [vmem:[#allocation2 + $0x10] sm:$0xff] 0.0
      %227 = vst [vmem:[#allocation2 + $0x18] sm:$0xff] 0.0
      %228 = vst [vmem:[#allocation2 + $0x20] sm:$0xff] 0.0
      %229 = vst [vmem:[#allocation2 + $0x28] sm:$0xff] 0.0
      %230 = vst [vmem:[#allocation2 + $0x30] sm:$0xff] 0.0
      %231 = vst [vmem:[#allocation2 + $0x38] sm:$0xff] 0.0
      %232 = vst [vmem:[#allocation2 + $0x40] sm:$0xff] 0.0
      %233 = vst [vmem:[#allocation2 + $0x48] sm:$0xff] 0.0
      %234 = vst [vmem:[#allocation2 + $0x50] sm:$0xff] 0.0
      %235 = vst [vmem:[#allocation2 + $0x58] sm:$0xff] 0.0
      %236 = vst [vmem:[#allocation2 + $0x60] sm:$0xff] 0.0
      %237 = vst [vmem:[#allocation2 + $0x68] sm:$0xff] 0.0
      %238 = vst [vmem:[#allocation2 + $0x70] sm:$0xff] 0.0
      %239 = vst [vmem:[#allocation2 + $0x78] sm:$0xff] 0.0
      %s240 = smul.u32 %s223, 3
      %s241 = smul.addr %s240, 4
      %s242 = scalar_lea.vmem %s211, %s241
      %v243 = vld [vmem:[%s242] sm:$0xf]
      %v244 = vld [vmem:[%s242 + $0x4] sm:$0xf]
      %v245 = vld [vmem:[%s242 + $0x8] sm:$0x1]
      %v246 = vld [vmem:[%s242 + $0xc] sm:$0xf]
      %v247 = vld [vmem:[%s242 + $0x10] sm:$0xf]
      %v248 = vld [vmem:[%s242 + $0x14] sm:$0x1]
      %v249 = vld [vmem:[%s242 + $0x18] sm:$0xf]
      %v250 = vld [vmem:[%s242 + $0x1c] sm:$0xf]
      %v251 = vld [vmem:[%s242 + $0x20] sm:$0x1]
      %v252 = vld [vmem:[%s242 + $0x24] sm:$0xf]
      %v253 = vld [vmem:[%s242 + $0x28] sm:$0xf]
      %v254 = vld [vmem:[%s242 + $0x2c] sm:$0x1]
      %v255 = vld [vmem:[%s242 + $0x30] sm:$0xf]
      %v256 = vld [vmem:[%s242 + $0x34] sm:$0xf]
      %v257 = vld [vmem:[%s242 + $0x38] sm:$0x1]
      %v258 = vld [vmem:[%s242 + $0x3c] sm:$0xf]
      %v259 = vld [vmem:[%s242 + $0x40] sm:$0xf]
      %v260 = vld [vmem:[%s242 + $0x44] sm:$0x1]
      %v261 = vld [vmem:[%s242 + $0x48] sm:$0xf]
      %v262 = vld [vmem:[%s242 + $0x4c] sm:$0xf]
      %v263 = vld [vmem:[%s242 + $0x50] sm:$0x1]
      %v264 = vld [vmem:[%s242 + $0x54] sm:$0xf]
      %v265 = vld [vmem:[%s242 + $0x58] sm:$0xf]
      %v266 = vld [vmem:[%s242 + $0x5c] sm:$0x1]
      %v283 = vunpack.c.l.b16 %v243
      %v284 = vunpack.c.l.b16 %v244
      %v285 = vunpack.c.l.b16 %v246
      %v286 = vunpack.c.l.b16 %v247
      %v287 = vunpack.c.l.b16 %v249
      %v288 = vunpack.c.l.b16 %v250
      %v289 = vunpack.c.l.b16 %v252
      %v290 = vunpack.c.l.b16 %v253
      %v291 = vunpack.c.l.b16 %v255
      %v292 = vunpack.c.l.b16 %v256
      %v293 = vunpack.c.l.b16 %v258
      %v294 = vunpack.c.l.b16 %v259
      %v295 = vunpack.c.l.b16 %v261
      %v296 = vunpack.c.l.b16 %v262
      %v297 = vunpack.c.l.b16 %v264
      %v298 = vunpack.c.l.b16 %v265
      %v299 = vpack.c.b16 %v284, %v283
      %v300 = vpack.c.b16 %v286, %v285
      %v301 = vpack.c.b16 %v288, %v287
      %v302 = vpack.c.b16 %v290, %v289
      %v303 = vpack.c.b16 %v292, %v291
      %v304 = vpack.c.b16 %v294, %v293
      %v305 = vpack.c.b16 %v296, %v295
      %v306 = vpack.c.b16 %v298, %v297
      %v323 = vunpack.c.l.b16 %v245
      %v324 = vunpack.c.l.b16 %v248
      %v325 = vunpack.c.l.b16 %v251
      %v326 = vunpack.c.l.b16 %v254
      %v327 = vunpack.c.l.b16 %v257
      %v328 = vunpack.c.l.b16 %v260
      %v329 = vunpack.c.l.b16 %v263
      %v330 = vunpack.c.l.b16 %v266
      %v331 = vpack.c.b16 %v323, %v323
      %v332 = vpack.c.b16 %v324, %v324
      %v333 = vpack.c.b16 %v325, %v325
      %v334 = vpack.c.b16 %v326, %v326
      %v335 = vpack.c.b16 %v327, %v327
      %v336 = vpack.c.b16 %v328, %v328
      %v337 = vpack.c.b16 %v329, %v329
      %v338 = vpack.c.b16 %v330, %v330
      %vm339 = vsmask.f32 7424
      %v341 = vshrl.u32 %v299, 16
      %v343 = vshll.u32 %v299, 16
      %v345 = vrot.slane %v343, 1
      %v346 = vor.u32 %v341, %v345
      %v348 = vshll.u32 %v331, 16
      %v350 = vrot.slane %v348, 1
      %v351 = vsel %vm339, %v346, %v350
      %v353 = vshrl.u32 %v300, 16
      %v355 = vshll.u32 %v300, 16
      %v357 = vrot.slane %v355, 1
      %v358 = vor.u32 %v353, %v357
      %v360 = vshll.u32 %v332, 16
      %v362 = vrot.slane %v360, 1
      %v363 = vsel %vm339, %v358, %v362
      %v365 = vshrl.u32 %v301, 16
      %v367 = vshll.u32 %v301, 16
      %v369 = vrot.slane %v367, 1
      %v370 = vor.u32 %v365, %v369
      %v372 = vshll.u32 %v333, 16
      %v374 = vrot.slane %v372, 1
      %v375 = vsel %vm339, %v370, %v374
      %v377 = vshrl.u32 %v302, 16
      %v379 = vshll.u32 %v302, 16
      %v381 = vrot.slane %v379, 1
      %v382 = vor.u32 %v377, %v381
      %v384 = vshll.u32 %v334, 16
      %v386 = vrot.slane %v384, 1
      %v387 = vsel %vm339, %v382, %v386
      %v389 = vshrl.u32 %v303, 16
      %v391 = vshll.u32 %v303, 16
      %v393 = vrot.slane %v391, 1
      %v394 = vor.u32 %v389, %v393
      %v396 = vshll.u32 %v335, 16
      %v398 = vrot.slane %v396, 1
      %v399 = vsel %vm339, %v394, %v398
      %v401 = vshrl.u32 %v304, 16
      %v403 = vshll.u32 %v304, 16
      %v405 = vrot.slane %v403, 1
      %v406 = vor.u32 %v401, %v405
      %v408 = vshll.u32 %v336, 16
      %v410 = vrot.slane %v408, 1
      %v411 = vsel %vm339, %v406, %v410
      %v413 = vshrl.u32 %v305, 16
      %v415 = vshll.u32 %v305, 16
      %v417 = vrot.slane %v415, 1
      %v418 = vor.u32 %v413, %v417
      %v420 = vshll.u32 %v337, 16
      %v422 = vrot.slane %v420, 1
      %v423 = vsel %vm339, %v418, %v422
      %v425 = vshrl.u32 %v306, 16
      %v427 = vshll.u32 %v306, 16
      %v429 = vrot.slane %v427, 1
      %v430 = vor.u32 %v425, %v429
      %v432 = vshll.u32 %v338, 16
      %v434 = vrot.slane %v432, 1
      %v435 = vsel %vm339, %v430, %v434
      %vm444 = vcmask 1046528
      %v445 = vrot.slane %v299, 1
      %v446 = vrot.slane %v331, 1
      %v447 = vsel %vm444, %v445, %v446
      %v448 = vrot.slane %v300, 1
      %v449 = vrot.slane %v332, 1
      %v450 = vsel %vm444, %v448, %v449
      %v451 = vrot.slane %v301, 1
      %v452 = vrot.slane %v333, 1
      %v453 = vsel %vm444, %v451, %v452
      %v454 = vrot.slane %v302, 1
      %v455 = vrot.slane %v334, 1
      %v456 = vsel %vm444, %v454, %v455
      %v457 = vrot.slane %v303, 1
      %v458 = vrot.slane %v335, 1
      %v459 = vsel %vm444, %v457, %v458
      %v460 = vrot.slane %v304, 1
      %v461 = vrot.slane %v336, 1
      %v462 = vsel %vm444, %v460, %v461
      %v463 = vrot.slane %v305, 1
      %v464 = vrot.slane %v337, 1
      %v465 = vsel %vm444, %v463, %v464
      %v466 = vrot.slane %v306, 1
      %v467 = vrot.slane %v338, 1
      %v468 = vsel %vm444, %v466, %v467
      %v477 = vld [vmem:[#allocation2] sm:$0xff]
      %v478 = vld [vmem:[#allocation2 + $0x8] sm:$0xff]
      %v479 = vld [vmem:[#allocation2 + $0x10] sm:$0xff]
      %v480 = vld [vmem:[#allocation2 + $0x18] sm:$0xff]
      %v481 = vld [vmem:[#allocation2 + $0x20] sm:$0xff]
      %v482 = vld [vmem:[#allocation2 + $0x28] sm:$0xff]
      %v483 = vld [vmem:[#allocation2 + $0x30] sm:$0xff]
      %v484 = vld [vmem:[#allocation2 + $0x38] sm:$0xff]
      %v485 = vld [vmem:[#allocation2 + $0x40] sm:$0xff]
      %v486 = vld [vmem:[#allocation2 + $0x48] sm:$0xff]
      %v487 = vld [vmem:[#allocation2 + $0x50] sm:$0xff]
      %v488 = vld [vmem:[#allocation2 + $0x58] sm:$0xff]
      %v489 = vld [vmem:[#allocation2 + $0x60] sm:$0xff]
      %v490 = vld [vmem:[#allocation2 + $0x68] sm:$0xff]
      %v491 = vld [vmem:[#allocation2 + $0x70] sm:$0xff]
      %v492 = vld [vmem:[#allocation2 + $0x78] sm:$0xff]
      %v493 = vld [vmem:[%s1] sm:$0xf]
      %v494 = vld [vmem:[%s1 + $0x4] sm:$0xf]
      %v495 = vld [vmem:[%s1 + $0x8] sm:$0xf]
      %v496 = vld [vmem:[%s1 + $0xc] sm:$0xf]
      %v497 = vld [vmem:[%s1 + $0x10] sm:$0xf]
      %v498 = vld [vmem:[%s1 + $0x14] sm:$0xf]
      %v499 = vld [vmem:[%s1 + $0x18] sm:$0xf]
      %v500 = vld [vmem:[%s1 + $0x1c] sm:$0xf]
      %v501 = vld [vmem:[%s1 + $0x20] sm:$0xf]
      %v502 = vld [vmem:[%s1 + $0x24] sm:$0xf]
      %v503 = vld [vmem:[%s1 + $0x28] sm:$0xf]
      %v504 = vld [vmem:[%s1 + $0x2c] sm:$0xf]
      %v505 = vld [vmem:[%s1 + $0x30] sm:$0xf]
      %v506 = vld [vmem:[%s1 + $0x34] sm:$0xf]
      %v507 = vld [vmem:[%s1 + $0x38] sm:$0xf]
      %v508 = vld [vmem:[%s1 + $0x3c] sm:$0xf]
      %v509 = vld [vmem:[%s1 + $0x40] sm:$0xf]
      %v510 = vld [vmem:[%s1 + $0x44] sm:$0xf]
      %v511 = vld [vmem:[%s1 + $0x48] sm:$0xf]
      %v512 = vld [vmem:[%s1 + $0x4c] sm:$0xf]
      %v513 = vld [vmem:[%s1 + $0x50] sm:$0xf]
      %v514 = vld [vmem:[%s1 + $0x54] sm:$0xf]
      %v515 = vld [vmem:[%s1 + $0x58] sm:$0xf]
      %v516 = vld [vmem:[%s1 + $0x5c] sm:$0xf]
      %v517 = vld [vmem:[%s1 + $0x60] sm:$0xf]
      %v518 = vld [vmem:[%s1 + $0x64] sm:$0xf]
      %v519 = vld [vmem:[%s1 + $0x68] sm:$0xf]
      %v520 = vld [vmem:[%s1 + $0x6c] sm:$0xf]
      %v521 = vld [vmem:[%s1 + $0x70] sm:$0xf]
      %v522 = vld [vmem:[%s1 + $0x74] sm:$0xf]
      %v523 = vld [vmem:[%s1 + $0x78] sm:$0xf]
      %v524 = vld [vmem:[%s1 + $0x7c] sm:$0xf]
      %v525 = vld [vmem:[%s1 + $0x80] sm:$0xf]
      %v526 = vld [vmem:[%s1 + $0x84] sm:$0xf]
      %v527 = vld [vmem:[%s1 + $0x88] sm:$0xf]
      %v528 = vld [vmem:[%s1 + $0x8c] sm:$0xf]
      %v529 = vld [vmem:[%s1 + $0x90] sm:$0xf]
      %v530 = vld [vmem:[%s1 + $0x94] sm:$0xf]
      %v531 = vld [vmem:[%s1 + $0x98] sm:$0xf]
      %v532 = vld [vmem:[%s1 + $0x9c] sm:$0xf]
      %v533 = vld [vmem:[%s1 + $0xa0] sm:$0xf]
      %v534 = vld [vmem:[%s1 + $0xa4] sm:$0xf]
      %v535 = vld [vmem:[%s1 + $0xa8] sm:$0xf]
      %v536 = vld [vmem:[%s1 + $0xac] sm:$0xf]
      %v537 = vld [vmem:[%s1 + $0xb0] sm:$0xf]
      %v538 = vld [vmem:[%s1 + $0xb4] sm:$0xf]
      %v539 = vld [vmem:[%s1 + $0xb8] sm:$0xf]
      %v540 = vld [vmem:[%s1 + $0xbc] sm:$0xf]
      %v589 = vunpack.c.l.b16 %v493
      %v590 = vunpack.c.l.b16 %v494
      %v591 = vunpack.c.l.b16 %v495
      %v592 = vunpack.c.l.b16 %v496
      %v593 = vunpack.c.l.b16 %v497
      %v594 = vunpack.c.l.b16 %v498
      %v595 = vunpack.c.l.b16 %v499
      %v596 = vunpack.c.l.b16 %v500
      %v597 = vunpack.c.l.b16 %v501
      %v598 = vunpack.c.l.b16 %v502
      %v599 = vunpack.c.l.b16 %v503
      %v600 = vunpack.c.l.b16 %v504
      %v601 = vunpack.c.l.b16 %v505
      %v602 = vunpack.c.l.b16 %v506
      %v603 = vunpack.c.l.b16 %v507
      %v604 = vunpack.c.l.b16 %v508
      %v605 = vunpack.c.l.b16 %v509
      %v606 = vunpack.c.l.b16 %v510
      %v607 = vunpack.c.l.b16 %v511
      %v608 = vunpack.c.l.b16 %v512
      %v609 = vunpack.c.l.b16 %v513
      %v610 = vunpack.c.l.b16 %v514
      %v611 = vunpack.c.l.b16 %v515
      %v612 = vunpack.c.l.b16 %v516
      %v613 = vunpack.c.l.b16 %v517
      %v614 = vunpack.c.l.b16 %v518
      %v615 = vunpack.c.l.b16 %v519
      %v616 = vunpack.c.l.b16 %v520
      %v617 = vunpack.c.l.b16 %v521
      %v618 = vunpack.c.l.b16 %v522
      %v619 = vunpack.c.l.b16 %v523
      %v620 = vunpack.c.l.b16 %v524
      %v621 = vunpack.c.l.b16 %v525
      %v622 = vunpack.c.l.b16 %v526
      %v623 = vunpack.c.l.b16 %v527
      %v624 = vunpack.c.l.b16 %v528
      %v625 = vunpack.c.l.b16 %v529
      %v626 = vunpack.c.l.b16 %v530
      %v627 = vunpack.c.l.b16 %v531
      %v628 = vunpack.c.l.b16 %v532
      %v629 = vunpack.c.l.b16 %v533
      %v630 = vunpack.c.l.b16 %v534
      %v631 = vunpack.c.l.b16 %v535
      %v632 = vunpack.c.l.b16 %v536
      %v633 = vunpack.c.l.b16 %v537
      %v634 = vunpack.c.l.b16 %v538
      %v635 = vunpack.c.l.b16 %v539
      %v636 = vunpack.c.l.b16 %v540
      %v637 = vpack.c.b16 %v590, %v589
      %v638 = vpack.c.b16 %v592, %v591
      %v639 = vpack.c.b16 %v594, %v593
      %v640 = vpack.c.b16 %v596, %v595
      %v641 = vpack.c.b16 %v598, %v597
      %v642 = vpack.c.b16 %v600, %v599
      %v643 = vpack.c.b16 %v602, %v601
      %v644 = vpack.c.b16 %v604, %v603
      %v645 = vpack.c.b16 %v606, %v605
      %v646 = vpack.c.b16 %v608, %v607
      %v647 = vpack.c.b16 %v610, %v609
      %v648 = vpack.c.b16 %v612, %v611
      %v649 = vpack.c.b16 %v614, %v613
      %v650 = vpack.c.b16 %v616, %v615
      %v651 = vpack.c.b16 %v618, %v617
      %v652 = vpack.c.b16 %v620, %v619
      %v653 = vpack.c.b16 %v622, %v621
      %v654 = vpack.c.b16 %v624, %v623
      %v655 = vpack.c.b16 %v626, %v625
      %v656 = vpack.c.b16 %v628, %v627
      %v657 = vpack.c.b16 %v630, %v629
      %v658 = vpack.c.b16 %v632, %v631
      %v659 = vpack.c.b16 %v634, %v633
      %v660 = vpack.c.b16 %v636, %v635
      %685 = vmatpush.bf16.msra.mxu0 %v644
      %686 = vmatpush.bf16.msra.mxu0 %v643
      %687 = vmatpush.bf16.msra.mxu0 %v642
      %688 = vmatpush.bf16.msra.mxu0 %v641
      %689 = vmatpush.bf16.msra.mxu0 %v640
      %690 = vmatpush.bf16.msra.mxu0 %v639
      %691 = vmatpush.bf16.msra.mxu0 %v638
      %692 = vmatpush.bf16.msra.mxu0 %v637
      %693 = vmatmul.bf16.gmra.mxu0 %v299
      %v694 = vpop.f32.mrf.mxu0
      %v695 = vadd.f32 0.0, %v694
      %v696 = vpop.f32.mrf.mxu0
      %v697 = vadd.f32 0.0, %v696
      %698 = vmatmul.bf16.gmra.mxu0 %v300
      %v699 = vpop.f32.mrf.mxu0
      %v700 = vadd.f32 0.0, %v699
      %v701 = vpop.f32.mrf.mxu0
      %v702 = vadd.f32 0.0, %v701
      %703 = vmatmul.bf16.gmra.mxu0 %v301
      %v704 = vpop.f32.mrf.mxu0
      %v705 = vadd.f32 0.0, %v704
      %v706 = vpop.f32.mrf.mxu0
      %v707 = vadd.f32 0.0, %v706
      %708 = vmatmul.bf16.gmra.mxu0 %v302
      %v709 = vpop.f32.mrf.mxu0
      %v710 = vadd.f32 0.0, %v709
      %v711 = vpop.f32.mrf.mxu0
      %v712 = vadd.f32 0.0, %v711
      %713 = vmatmul.bf16.gmra.mxu0 %v303
      %v714 = vpop.f32.mrf.mxu0
      %v715 = vadd.f32 0.0, %v714
      %v716 = vpop.f32.mrf.mxu0
      %v717 = vadd.f32 0.0, %v716
      %718 = vmatmul.bf16.gmra.mxu0 %v304
      %v719 = vpop.f32.mrf.mxu0
      %v720 = vadd.f32 0.0, %v719
      %v721 = vpop.f32.mrf.mxu0
      %v722 = vadd.f32 0.0, %v721
      %723 = vmatmul.bf16.gmra.mxu0 %v305
      %v724 = vpop.f32.mrf.mxu0
      %v725 = vadd.f32 0.0, %v724
      %v726 = vpop.f32.mrf.mxu0
      %v727 = vadd.f32 0.0, %v726
      %728 = vmatmul.bf16.gmra.mxu0 %v306
      %v729 = vpop.f32.mrf.mxu0
      %v730 = vadd.f32 0.0, %v729
      %v731 = vpop.f32.mrf.mxu0
      %v732 = vadd.f32 0.0, %v731
      %733 = vdwg.mxu0
      %734 = vmatpush.bf16.msra.mxu0 %v652
      %735 = vmatpush.bf16.msra.mxu0 %v651
      %736 = vmatpush.bf16.msra.mxu0 %v650
      %737 = vmatpush.bf16.msra.mxu0 %v649
      %738 = vmatpush.bf16.msra.mxu0 %v648
      %739 = vmatpush.bf16.msra.mxu0 %v647
      %740 = vmatpush.bf16.msra.mxu0 %v646
      %741 = vmatpush.bf16.msra.mxu0 %v645
      %742 = vmatmul.bf16.gmra.mxu0 %v351
      %v743 = vpop.f32.mrf.mxu0
      %v744 = vadd.f32 %v695, %v743
      %v745 = vpop.f32.mrf.mxu0
      %v746 = vadd.f32 %v697, %v745
      %747 = vmatmul.bf16.gmra.mxu0 %v363
      %v748 = vpop.f32.mrf.mxu0
      %v749 = vadd.f32 %v700, %v748
      %v750 = vpop.f32.mrf.mxu0
      %v751 = vadd.f32 %v702, %v750
      %752 = vmatmul.bf16.gmra.mxu0 %v375
      %v753 = vpop.f32.mrf.mxu0
      %v754 = vadd.f32 %v705, %v753
      %v755 = vpop.f32.mrf.mxu0
      %v756 = vadd.f32 %v707, %v755
      %757 = vmatmul.bf16.gmra.mxu0 %v387
      %v758 = vpop.f32.mrf.mxu0
      %v759 = vadd.f32 %v710, %v758
      %v760 = vpop.f32.mrf.mxu0
      %v761 = vadd.f32 %v712, %v760
      %762 = vmatmul.bf16.gmra.mxu0 %v399
      %v763 = vpop.f32.mrf.mxu0
      %v764 = vadd.f32 %v715, %v763
      %v765 = vpop.f32.mrf.mxu0
      %v766 = vadd.f32 %v717, %v765
      %767 = vmatmul.bf16.gmra.mxu0 %v411
      %v768 = vpop.f32.mrf.mxu0
      %v769 = vadd.f32 %v720, %v768
      %v770 = vpop.f32.mrf.mxu0
      %v771 = vadd.f32 %v722, %v770
      %772 = vmatmul.bf16.gmra.mxu0 %v423
      %v773 = vpop.f32.mrf.mxu0
      %v774 = vadd.f32 %v725, %v773
      %v775 = vpop.f32.mrf.mxu0
      %v776 = vadd.f32 %v727, %v775
      %777 = vmatmul.bf16.gmra.mxu0 %v435
      %v778 = vpop.f32.mrf.mxu0
      %v779 = vadd.f32 %v730, %v778
      %v780 = vpop.f32.mrf.mxu0
      %v781 = vadd.f32 %v732, %v780
      %782 = vdwg.mxu0
      %783 = vmatpush.bf16.msra.mxu0 %v660
      %784 = vmatpush.bf16.msra.mxu0 %v659
      %785 = vmatpush.bf16.msra.mxu0 %v658
      %786 = vmatpush.bf16.msra.mxu0 %v657
      %787 = vmatpush.bf16.msra.mxu0 %v656
      %788 = vmatpush.bf16.msra.mxu0 %v655
      %789 = vmatpush.bf16.msra.mxu0 %v654
      %790 = vmatpush.bf16.msra.mxu0 %v653
      %791 = vmatmul.bf16.gmra.mxu0 %v447
      %v792 = vpop.f32.mrf.mxu0
      %v793 = vadd.f32 %v744, %v792
      %v794 = vpop.f32.mrf.mxu0
      %v795 = vadd.f32 %v746, %v794
      %796 = vmatmul.bf16.gmra.mxu0 %v450
      %v797 = vpop.f32.mrf.mxu0
      %v798 = vadd.f32 %v749, %v797
      %v799 = vpop.f32.mrf.mxu0
      %v800 = vadd.f32 %v751, %v799
      %801 = vmatmul.bf16.gmra.mxu0 %v453
      %v802 = vpop.f32.mrf.mxu0
      %v803 = vadd.f32 %v754, %v802
      %v804 = vpop.f32.mrf.mxu0
      %v805 = vadd.f32 %v756, %v804
      %806 = vmatmul.bf16.gmra.mxu0 %v456
      %v807 = vpop.f32.mrf.mxu0
      %v808 = vadd.f32 %v759, %v807
      %v809 = vpop.f32.mrf.mxu0
      %v810 = vadd.f32 %v761, %v809
      %811 = vmatmul.bf16.gmra.mxu0 %v459
      %v812 = vpop.f32.mrf.mxu0
      %v813 = vadd.f32 %v764, %v812
      %v814 = vpop.f32.mrf.mxu0
      %v815 = vadd.f32 %v766, %v814
      %816 = vmatmul.bf16.gmra.mxu0 %v462
      %v817 = vpop.f32.mrf.mxu0
      %v818 = vadd.f32 %v769, %v817
      %v819 = vpop.f32.mrf.mxu0
      %v820 = vadd.f32 %v771, %v819
      %821 = vmatmul.bf16.gmra.mxu0 %v465
      %v822 = vpop.f32.mrf.mxu0
      %v823 = vadd.f32 %v774, %v822
      %v824 = vpop.f32.mrf.mxu0
      %v825 = vadd.f32 %v776, %v824
      %826 = vmatmul.bf16.gmra.mxu0 %v468
      %v827 = vpop.f32.mrf.mxu0
      %v828 = vadd.f32 %v779, %v827
      %v829 = vpop.f32.mrf.mxu0
      %v830 = vadd.f32 %v781, %v829
      %831 = vdwg.mxu0
      %v832 = vadd.f32 %v477, %v793
      %v833 = vadd.f32 %v478, %v795
      %v834 = vadd.f32 %v479, %v798
      %v835 = vadd.f32 %v480, %v800
      %v836 = vadd.f32 %v481, %v803
      %v837 = vadd.f32 %v482, %v805
      %v838 = vadd.f32 %v483, %v808
      %v839 = vadd.f32 %v484, %v810
      %v840 = vadd.f32 %v485, %v813
      %v841 = vadd.f32 %v486, %v815
      %v842 = vadd.f32 %v487, %v818
      %v843 = vadd.f32 %v488, %v820
      %v844 = vadd.f32 %v489, %v823
      %v845 = vadd.f32 %v490, %v825
      %v846 = vadd.f32 %v491, %v828
      %v847 = vadd.f32 %v492, %v830
      %848 = vst [vmem:[#allocation2] sm:$0xff] %v832
      %849 = vst [vmem:[#allocation2 + $0x8] sm:$0xff] %v833
      %850 = vst [vmem:[#allocation2 + $0x10] sm:$0xff] %v834
      %851 = vst [vmem:[#allocation2 + $0x18] sm:$0xff] %v835
      %852 = vst [vmem:[#allocation2 + $0x20] sm:$0xff] %v836
      %853 = vst [vmem:[#allocation2 + $0x28] sm:$0xff] %v837
      %854 = vst [vmem:[#allocation2 + $0x30] sm:$0xff] %v838
      %855 = vst [vmem:[#allocation2 + $0x38] sm:$0xff] %v839
      %856 = vst [vmem:[#allocation2 + $0x40] sm:$0xff] %v840
      %857 = vst [vmem:[#allocation2 + $0x48] sm:$0xff] %v841
      %858 = vst [vmem:[#allocation2 + $0x50] sm:$0xff] %v842
      %859 = vst [vmem:[#allocation2 + $0x58] sm:$0xff] %v843
      %860 = vst [vmem:[#allocation2 + $0x60] sm:$0xff] %v844
      %861 = vst [vmem:[#allocation2 + $0x68] sm:$0xff] %v845
      %862 = vst [vmem:[#allocation2 + $0x70] sm:$0xff] %v846
      %863 = vst [vmem:[#allocation2 + $0x78] sm:$0xff] %v847
      %s864 = sadd.s32 %s223, 1
      %s865 = smul.u32 %s864, 3
      %s866 = smul.addr %s865, 4
      %s867 = scalar_lea.vmem %s211, %s866
      %v868 = vld [vmem:[%s867] sm:$0xf]
      %v869 = vld [vmem:[%s867 + $0x4] sm:$0xf]
      %v870 = vld [vmem:[%s867 + $0x8] sm:$0x1]
      %v871 = vld [vmem:[%s867 + $0xc] sm:$0xf]
      %v872 = vld [vmem:[%s867 + $0x10] sm:$0xf]
      %v873 = vld [vmem:[%s867 + $0x14] sm:$0x1]
      %v874 = vld [vmem:[%s867 + $0x18] sm:$0xf]
      %v875 = vld [vmem:[%s867 + $0x1c] sm:$0xf]
      %v876 = vld [vmem:[%s867 + $0x20] sm:$0x1]
      %v877 = vld [vmem:[%s867 + $0x24] sm:$0xf]
      %v878 = vld [vmem:[%s867 + $0x28] sm:$0xf]
      %v879 = vld [vmem:[%s867 + $0x2c] sm:$0x1]
      %v880 = vld [vmem:[%s867 + $0x30] sm:$0xf]
      %v881 = vld [vmem:[%s867 + $0x34] sm:$0xf]
      %v882 = vld [vmem:[%s867 + $0x38] sm:$0x1]
      %v883 = vld [vmem:[%s867 + $0x3c] sm:$0xf]
      %v884 = vld [vmem:[%s867 + $0x40] sm:$0xf]
      %v885 = vld [vmem:[%s867 + $0x44] sm:$0x1]
      %v886 = vld [vmem:[%s867 + $0x48] sm:$0xf]
      %v887 = vld [vmem:[%s867 + $0x4c] sm:$0xf]
      %v888 = vld [vmem:[%s867 + $0x50] sm:$0x1]
      %v889 = vld [vmem:[%s867 + $0x54] sm:$0xf]
      %v890 = vld [vmem:[%s867 + $0x58] sm:$0xf]
      %v891 = vld [vmem:[%s867 + $0x5c] sm:$0x1]
      %v908 = vunpack.c.l.b16 %v868
      %v909 = vunpack.c.l.b16 %v869
      %v910 = vunpack.c.l.b16 %v871
      %v911 = vunpack.c.l.b16 %v872
      %v912 = vunpack.c.l.b16 %v874
      %v913 = vunpack.c.l.b16 %v875
      %v914 = vunpack.c.l.b16 %v877
      %v915 = vunpack.c.l.b16 %v878
      %v916 = vunpack.c.l.b16 %v880
      %v917 = vunpack.c.l.b16 %v881
      %v918 = vunpack.c.l.b16 %v883
      %v919 = vunpack.c.l.b16 %v884
      %v920 = vunpack.c.l.b16 %v886
      %v921 = vunpack.c.l.b16 %v887
      %v922 = vunpack.c.l.b16 %v889
      %v923 = vunpack.c.l.b16 %v890
      %v924 = vpack.c.b16 %v909, %v908
      %v925 = vpack.c.b16 %v911, %v910
      %v926 = vpack.c.b16 %v913, %v912
      %v927 = vpack.c.b16 %v915, %v914
      %v928 = vpack.c.b16 %v917, %v916
      %v929 = vpack.c.b16 %v919, %v918
      %v930 = vpack.c.b16 %v921, %v920
      %v931 = vpack.c.b16 %v923, %v922
      %v948 = vunpack.c.l.b16 %v870
      %v949 = vunpack.c.l.b16 %v873
      %v950 = vunpack.c.l.b16 %v876
      %v951 = vunpack.c.l.b16 %v879
      %v952 = vunpack.c.l.b16 %v882
      %v953 = vunpack.c.l.b16 %v885
      %v954 = vunpack.c.l.b16 %v888
      %v955 = vunpack.c.l.b16 %v891
      %v956 = vpack.c.b16 %v948, %v948
      %v957 = vpack.c.b16 %v949, %v949
      %v958 = vpack.c.b16 %v950, %v950
      %v959 = vpack.c.b16 %v951, %v951
      %v960 = vpack.c.b16 %v952, %v952
      %v961 = vpack.c.b16 %v953, %v953
      %v962 = vpack.c.b16 %v954, %v954
      %v963 = vpack.c.b16 %v955, %v955
      %v965 = vshrl.u32 %v924, 16
      %v967 = vshll.u32 %v924, 16
      %v969 = vrot.slane %v967, 1
      %v970 = vor.u32 %v965, %v969
      %v972 = vshll.u32 %v956, 16
      %v974 = vrot.slane %v972, 1
      %v975 = vsel %vm339, %v970, %v974
      %v977 = vshrl.u32 %v925, 16
      %v979 = vshll.u32 %v925, 16
      %v981 = vrot.slane %v979, 1
      %v982 = vor.u32 %v977, %v981
      %v984 = vshll.u32 %v957, 16
      %v986 = vrot.slane %v984, 1
      %v987 = vsel %vm339, %v982, %v986
      %v989 = vshrl.u32 %v926, 16
      %v991 = vshll.u32 %v926, 16
      %v993 = vrot.slane %v991, 1
      %v994 = vor.u32 %v989, %v993
      %v996 = vshll.u32 %v958, 16
      %v998 = vrot.slane %v996, 1
      %v999 = vsel %vm339, %v994, %v998
      %v1001 = vshrl.u32 %v927, 16
      %v1003 = vshll.u32 %v927, 16
      %v1005 = vrot.slane %v1003, 1
      %v1006 = vor.u32 %v1001, %v1005
      %v1008 = vshll.u32 %v959, 16
      %v1010 = vrot.slane %v1008, 1
      %v1011 = vsel %vm339, %v1006, %v1010
      %v1013 = vshrl.u32 %v928, 16
      %v1015 = vshll.u32 %v928, 16
      %v1017 = vrot.slane %v1015, 1
      %v1018 = vor.u32 %v1013, %v1017
      %v1020 = vshll.u32 %v960, 16
      %v1022 = vrot.slane %v1020, 1
      %v1023 = vsel %vm339, %v1018, %v1022
      %v1025 = vshrl.u32 %v929, 16
      %v1027 = vshll.u32 %v929, 16
      %v1029 = vrot.slane %v1027, 1
      %v1030 = vor.u32 %v1025, %v1029
      %v1032 = vshll.u32 %v961, 16
      %v1034 = vrot.slane %v1032, 1
      %v1035 = vsel %vm339, %v1030, %v1034
      %v1037 = vshrl.u32 %v930, 16
      %v1039 = vshll.u32 %v930, 16
      %v1041 = vrot.slane %v1039, 1
      %v1042 = vor.u32 %v1037, %v1041
      %v1044 = vshll.u32 %v962, 16
      %v1046 = vrot.slane %v1044, 1
      %v1047 = vsel %vm339, %v1042, %v1046
      %v1049 = vshrl.u32 %v931, 16
      %v1051 = vshll.u32 %v931, 16
      %v1053 = vrot.slane %v1051, 1
      %v1054 = vor.u32 %v1049, %v1053
      %v1056 = vshll.u32 %v963, 16
      %v1058 = vrot.slane %v1056, 1
      %v1059 = vsel %vm339, %v1054, %v1058
      %v1068 = vrot.slane %v924, 1
      %v1069 = vrot.slane %v956, 1
      %v1070 = vsel %vm444, %v1068, %v1069
      %v1071 = vrot.slane %v925, 1
      %v1072 = vrot.slane %v957, 1
      %v1073 = vsel %vm444, %v1071, %v1072
      %v1074 = vrot.slane %v926, 1
      %v1075 = vrot.slane %v958, 1
      %v1076 = vsel %vm444, %v1074, %v1075
      %v1077 = vrot.slane %v927, 1
      %v1078 = vrot.slane %v959, 1
      %v1079 = vsel %vm444, %v1077, %v1078
      %v1080 = vrot.slane %v928, 1
      %v1081 = vrot.slane %v960, 1
      %v1082 = vsel %vm444, %v1080, %v1081
      %v1083 = vrot.slane %v929, 1
      %v1084 = vrot.slane %v961, 1
      %v1085 = vsel %vm444, %v1083, %v1084
      %v1086 = vrot.slane %v930, 1
      %v1087 = vrot.slane %v962, 1
      %v1088 = vsel %vm444, %v1086, %v1087
      %v1089 = vrot.slane %v931, 1
      %v1090 = vrot.slane %v963, 1
      %v1091 = vsel %vm444, %v1089, %v1090
      %v1100 = vld [vmem:[#allocation2] sm:$0xff]
      %v1101 = vld [vmem:[#allocation2 + $0x8] sm:$0xff]
      %v1102 = vld [vmem:[#allocation2 + $0x10] sm:$0xff]
      %v1103 = vld [vmem:[#allocation2 + $0x18] sm:$0xff]
      %v1104 = vld [vmem:[#allocation2 + $0x20] sm:$0xff]
      %v1105 = vld [vmem:[#allocation2 + $0x28] sm:$0xff]
      %v1106 = vld [vmem:[#allocation2 + $0x30] sm:$0xff]
      %v1107 = vld [vmem:[#allocation2 + $0x38] sm:$0xff]
      %v1108 = vld [vmem:[#allocation2 + $0x40] sm:$0xff]
      %v1109 = vld [vmem:[#allocation2 + $0x48] sm:$0xff]
      %v1110 = vld [vmem:[#allocation2 + $0x50] sm:$0xff]
      %v1111 = vld [vmem:[#allocation2 + $0x58] sm:$0xff]
      %v1112 = vld [vmem:[#allocation2 + $0x60] sm:$0xff]
      %v1113 = vld [vmem:[#allocation2 + $0x68] sm:$0xff]
      %v1114 = vld [vmem:[#allocation2 + $0x70] sm:$0xff]
      %v1115 = vld [vmem:[#allocation2 + $0x78] sm:$0xff]
      %s1116 = scalar_lea.vmem %s1, 192
      %v1117 = vld [vmem:[%s1116] sm:$0xf]
      %v1118 = vld [vmem:[%s1116 + $0x4] sm:$0xf]
      %v1119 = vld [vmem:[%s1116 + $0x8] sm:$0xf]
      %v1120 = vld [vmem:[%s1116 + $0xc] sm:$0xf]
      %v1121 = vld [vmem:[%s1116 + $0x10] sm:$0xf]
      %v1122 = vld [vmem:[%s1116 + $0x14] sm:$0xf]
      %v1123 = vld [vmem:[%s1116 + $0x18] sm:$0xf]
      %v1124 = vld [vmem:[%s1116 + $0x1c] sm:$0xf]
      %v1125 = vld [vmem:[%s1116 + $0x20] sm:$0xf]
      %v1126 = vld [vmem:[%s1116 + $0x24] sm:$0xf]
      %v1127 = vld [vmem:[%s1116 + $0x28] sm:$0xf]
      %v1128 = vld [vmem:[%s1116 + $0x2c] sm:$0xf]
      %v1129 = vld [vmem:[%s1116 + $0x30] sm:$0xf]
      %v1130 = vld [vmem:[%s1116 + $0x34] sm:$0xf]
      %v1131 = vld [vmem:[%s1116 + $0x38] sm:$0xf]
      %v1132 = vld [vmem:[%s1116 + $0x3c] sm:$0xf]
      %v1133 = vld [vmem:[%s1116 + $0x40] sm:$0xf]
      %v1134 = vld [vmem:[%s1116 + $0x44] sm:$0xf]
      %v1135 = vld [vmem:[%s1116 + $0x48] sm:$0xf]
      %v1136 = vld [vmem:[%s1116 + $0x4c] sm:$0xf]
      %v1137 = vld [vmem:[%s1116 + $0x50] sm:$0xf]
      %v1138 = vld [vmem:[%s1116 + $0x54] sm:$0xf]
      %v1139 = vld [vmem:[%s1116 + $0x58] sm:$0xf]
      %v1140 = vld [vmem:[%s1116 + $0x5c] sm:$0xf]
      %v1141 = vld [vmem:[%s1116 + $0x60] sm:$0xf]
      %v1142 = vld [vmem:[%s1116 + $0x64] sm:$0xf]
      %v1143 = vld [vmem:[%s1116 + $0x68] sm:$0xf]
      %v1144 = vld [vmem:[%s1116 + $0x6c] sm:$0xf]
      %v1145 = vld [vmem:[%s1116 + $0x70] sm:$0xf]
      %v1146 = vld [vmem:[%s1116 + $0x74] sm:$0xf]
      %v1147 = vld [vmem:[%s1116 + $0x78] sm:$0xf]
      %v1148 = vld [vmem:[%s1116 + $0x7c] sm:$0xf]
      %v1149 = vld [vmem:[%s1116 + $0x80] sm:$0xf]
      %v1150 = vld [vmem:[%s1116 + $0x84] sm:$0xf]
      %v1151 = vld [vmem:[%s1116 + $0x88] sm:$0xf]
      %v1152 = vld [vmem:[%s1116 + $0x8c] sm:$0xf]
      %v1153 = vld [vmem:[%s1116 + $0x90] sm:$0xf]
      %v1154 = vld [vmem:[%s1116 + $0x94] sm:$0xf]
      %v1155 = vld [vmem:[%s1116 + $0x98] sm:$0xf]
      %v1156 = vld [vmem:[%s1116 + $0x9c] sm:$0xf]
      %v1157 = vld [vmem:[%s1116 + $0xa0] sm:$0xf]
      %v1158 = vld [vmem:[%s1116 + $0xa4] sm:$0xf]
      %v1159 = vld [vmem:[%s1116 + $0xa8] sm:$0xf]
      %v1160 = vld [vmem:[%s1116 + $0xac] sm:$0xf]
      %v1161 = vld [vmem:[%s1116 + $0xb0] sm:$0xf]
      %v1162 = vld [vmem:[%s1116 + $0xb4] sm:$0xf]
      %v1163 = vld [vmem:[%s1116 + $0xb8] sm:$0xf]
      %v1164 = vld [vmem:[%s1116 + $0xbc] sm:$0xf]
      %v1213 = vunpack.c.l.b16 %v1117
      %v1214 = vunpack.c.l.b16 %v1118
      %v1215 = vunpack.c.l.b16 %v1119
      %v1216 = vunpack.c.l.b16 %v1120
      %v1217 = vunpack.c.l.b16 %v1121
      %v1218 = vunpack.c.l.b16 %v1122
      %v1219 = vunpack.c.l.b16 %v1123
      %v1220 = vunpack.c.l.b16 %v1124
      %v1221 = vunpack.c.l.b16 %v1125
      %v1222 = vunpack.c.l.b16 %v1126
      %v1223 = vunpack.c.l.b16 %v1127
      %v1224 = vunpack.c.l.b16 %v1128
      %v1225 = vunpack.c.l.b16 %v1129
      %v1226 = vunpack.c.l.b16 %v1130
      %v1227 = vunpack.c.l.b16 %v1131
      %v1228 = vunpack.c.l.b16 %v1132
      %v1229 = vunpack.c.l.b16 %v1133
      %v1230 = vunpack.c.l.b16 %v1134
      %v1231 = vunpack.c.l.b16 %v1135
      %v1232 = vunpack.c.l.b16 %v1136
      %v1233 = vunpack.c.l.b16 %v1137
      %v1234 = vunpack.c.l.b16 %v1138
      %v1235 = vunpack.c.l.b16 %v1139
      %v1236 = vunpack.c.l.b16 %v1140
      %v1237 = vunpack.c.l.b16 %v1141
      %v1238 = vunpack.c.l.b16 %v1142
      %v1239 = vunpack.c.l.b16 %v1143
      %v1240 = vunpack.c.l.b16 %v1144
      %v1241 = vunpack.c.l.b16 %v1145
      %v1242 = vunpack.c.l.b16 %v1146
      %v1243 = vunpack.c.l.b16 %v1147
      %v1244 = vunpack.c.l.b16 %v1148
      %v1245 = vunpack.c.l.b16 %v1149
      %v1246 = vunpack.c.l.b16 %v1150
      %v1247 = vunpack.c.l.b16 %v1151
      %v1248 = vunpack.c.l.b16 %v1152
      %v1249 = vunpack.c.l.b16 %v1153
      %v1250 = vunpack.c.l.b16 %v1154
      %v1251 = vunpack.c.l.b16 %v1155
      %v1252 = vunpack.c.l.b16 %v1156
      %v1253 = vunpack.c.l.b16 %v1157
      %v1254 = vunpack.c.l.b16 %v1158
      %v1255 = vunpack.c.l.b16 %v1159
      %v1256 = vunpack.c.l.b16 %v1160
      %v1257 = vunpack.c.l.b16 %v1161
      %v1258 = vunpack.c.l.b16 %v1162
      %v1259 = vunpack.c.l.b16 %v1163
      %v1260 = vunpack.c.l.b16 %v1164
      %v1261 = vpack.c.b16 %v1214, %v1213
      %v1262 = vpack.c.b16 %v1216, %v1215
      %v1263 = vpack.c.b16 %v1218, %v1217
      %v1264 = vpack.c.b16 %v1220, %v1219
      %v1265 = vpack.c.b16 %v1222, %v1221
      %v1266 = vpack.c.b16 %v1224, %v1223
      %v1267 = vpack.c.b16 %v1226, %v1225
      %v1268 = vpack.c.b16 %v1228, %v1227
      %v1269 = vpack.c.b16 %v1230, %v1229
      %v1270 = vpack.c.b16 %v1232, %v1231
      %v1271 = vpack.c.b16 %v1234, %v1233
      %v1272 = vpack.c.b16 %v1236, %v1235
      %v1273 = vpack.c.b16 %v1238, %v1237
      %v1274 = vpack.c.b16 %v1240, %v1239
      %v1275 = vpack.c.b16 %v1242, %v1241
      %v1276 = vpack.c.b16 %v1244, %v1243
      %v1277 = vpack.c.b16 %v1246, %v1245
      %v1278 = vpack.c.b16 %v1248, %v1247
      %v1279 = vpack.c.b16 %v1250, %v1249
      %v1280 = vpack.c.b16 %v1252, %v1251
      %v1281 = vpack.c.b16 %v1254, %v1253
      %v1282 = vpack.c.b16 %v1256, %v1255
      %v1283 = vpack.c.b16 %v1258, %v1257
      %v1284 = vpack.c.b16 %v1260, %v1259
      %1309 = vmatpush.bf16.msra.mxu0 %v1268
      %1310 = vmatpush.bf16.msra.mxu0 %v1267
      %1311 = vmatpush.bf16.msra.mxu0 %v1266
      %1312 = vmatpush.bf16.msra.mxu0 %v1265
      %1313 = vmatpush.bf16.msra.mxu0 %v1264
      %1314 = vmatpush.bf16.msra.mxu0 %v1263
      %1315 = vmatpush.bf16.msra.mxu0 %v1262
      %1316 = vmatpush.bf16.msra.mxu0 %v1261
      %1317 = vmatmul.bf16.gmra.mxu0 %v924
      %v1318 = vpop.f32.mrf.mxu0
      %v1319 = vadd.f32 0.0, %v1318
      %v1320 = vpop.f32.mrf.mxu0
      %v1321 = vadd.f32 0.0, %v1320
      %1322 = vmatmul.bf16.gmra.mxu0 %v925
      %v1323 = vpop.f32.mrf.mxu0
      %v1324 = vadd.f32 0.0, %v1323
      %v1325 = vpop.f32.mrf.mxu0
      %v1326 = vadd.f32 0.0, %v1325
      %1327 = vmatmul.bf16.gmra.mxu0 %v926
      %v1328 = vpop.f32.mrf.mxu0
      %v1329 = vadd.f32 0.0, %v1328
      %v1330 = vpop.f32.mrf.mxu0
      %v1331 = vadd.f32 0.0, %v1330
      %1332 = vmatmul.bf16.gmra.mxu0 %v927
      %v1333 = vpop.f32.mrf.mxu0
      %v1334 = vadd.f32 0.0, %v1333
      %v1335 = vpop.f32.mrf.mxu0
      %v1336 = vadd.f32 0.0, %v1335
      %1337 = vmatmul.bf16.gmra.mxu0 %v928
      %v1338 = vpop.f32.mrf.mxu0
      %v1339 = vadd.f32 0.0, %v1338
      %v1340 = vpop.f32.mrf.mxu0
      %v1341 = vadd.f32 0.0, %v1340
      %1342 = vmatmul.bf16.gmra.mxu0 %v929
      %v1343 = vpop.f32.mrf.mxu0
      %v1344 = vadd.f32 0.0, %v1343
      %v1345 = vpop.f32.mrf.mxu0
      %v1346 = vadd.f32 0.0, %v1345
      %1347 = vmatmul.bf16.gmra.mxu0 %v930
      %v1348 = vpop.f32.mrf.mxu0
      %v1349 = vadd.f32 0.0, %v1348
      %v1350 = vpop.f32.mrf.mxu0
      %v1351 = vadd.f32 0.0, %v1350
      %1352 = vmatmul.bf16.gmra.mxu0 %v931
      %v1353 = vpop.f32.mrf.mxu0
      %v1354 = vadd.f32 0.0, %v1353
      %v1355 = vpop.f32.mrf.mxu0
      %v1356 = vadd.f32 0.0, %v1355
      %1357 = vdwg.mxu0
      %1358 = vmatpush.bf16.msra.mxu0 %v1276
      %1359 = vmatpush.bf16.msra.mxu0 %v1275
      %1360 = vmatpush.bf16.msra.mxu0 %v1274
      %1361 = vmatpush.bf16.msra.mxu0 %v1273
      %1362 = vmatpush.bf16.msra.mxu0 %v1272
      %1363 = vmatpush.bf16.msra.mxu0 %v1271
      %1364 = vmatpush.bf16.msra.mxu0 %v1270
      %1365 = vmatpush.bf16.msra.mxu0 %v1269
      %1366 = vmatmul.bf16.gmra.mxu0 %v975
      %v1367 = vpop.f32.mrf.mxu0
      %v1368 = vadd.f32 %v1319, %v1367
      %v1369 = vpop.f32.mrf.mxu0
      %v1370 = vadd.f32 %v1321, %v1369
      %1371 = vmatmul.bf16.gmra.mxu0 %v987
      %v1372 = vpop.f32.mrf.mxu0
      %v1373 = vadd.f32 %v1324, %v1372
      %v1374 = vpop.f32.mrf.mxu0
      %v1375 = vadd.f32 %v1326, %v1374
      %1376 = vmatmul.bf16.gmra.mxu0 %v999
      %v1377 = vpop.f32.mrf.mxu0
      %v1378 = vadd.f32 %v1329, %v1377
      %v1379 = vpop.f32.mrf.mxu0
      %v1380 = vadd.f32 %v1331, %v1379
      %1381 = vmatmul.bf16.gmra.mxu0 %v1011
      %v1382 = vpop.f32.mrf.mxu0
      %v1383 = vadd.f32 %v1334, %v1382
      %v1384 = vpop.f32.mrf.mxu0
      %v1385 = vadd.f32 %v1336, %v1384
      %1386 = vmatmul.bf16.gmra.mxu0 %v1023
      %v1387 = vpop.f32.mrf.mxu0
      %v1388 = vadd.f32 %v1339, %v1387
      %v1389 = vpop.f32.mrf.mxu0
      %v1390 = vadd.f32 %v1341, %v1389
      %1391 = vmatmul.bf16.gmra.mxu0 %v1035
      %v1392 = vpop.f32.mrf.mxu0
      %v1393 = vadd.f32 %v1344, %v1392
      %v1394 = vpop.f32.mrf.mxu0
      %v1395 = vadd.f32 %v1346, %v1394
      %1396 = vmatmul.bf16.gmra.mxu0 %v1047
      %v1397 = vpop.f32.mrf.mxu0
      %v1398 = vadd.f32 %v1349, %v1397
      %v1399 = vpop.f32.mrf.mxu0
      %v1400 = vadd.f32 %v1351, %v1399
      %1401 = vmatmul.bf16.gmra.mxu0 %v1059
      %v1402 = vpop.f32.mrf.mxu0
      %v1403 = vadd.f32 %v1354, %v1402
      %v1404 = vpop.f32.mrf.mxu0
      %v1405 = vadd.f32 %v1356, %v1404
      %1406 = vdwg.mxu0
      %1407 = vmatpush.bf16.msra.mxu0 %v1284
      %1408 = vmatpush.bf16.msra.mxu0 %v1283
      %1409 = vmatpush.bf16.msra.mxu0 %v1282
      %1410 = vmatpush.bf16.msra.mxu0 %v1281
      %1411 = vmatpush.bf16.msra.mxu0 %v1280
      %1412 = vmatpush.bf16.msra.mxu0 %v1279
      %1413 = vmatpush.bf16.msra.mxu0 %v1278
      %1414 = vmatpush.bf16.msra.mxu0 %v1277
      %1415 = vmatmul.bf16.gmra.mxu0 %v1070
      %v1416 = vpop.f32.mrf.mxu0
      %v1417 = vadd.f32 %v1368, %v1416
      %v1418 = vpop.f32.mrf.mxu0
      %v1419 = vadd.f32 %v1370, %v1418
      %1420 = vmatmul.bf16.gmra.mxu0 %v1073
      %v1421 = vpop.f32.mrf.mxu0
      %v1422 = vadd.f32 %v1373, %v1421
      %v1423 = vpop.f32.mrf.mxu0
      %v1424 = vadd.f32 %v1375, %v1423
      %1425 = vmatmul.bf16.gmra.mxu0 %v1076
      %v1426 = vpop.f32.mrf.mxu0
      %v1427 = vadd.f32 %v1378, %v1426
      %v1428 = vpop.f32.mrf.mxu0
      %v1429 = vadd.f32 %v1380, %v1428
      %1430 = vmatmul.bf16.gmra.mxu0 %v1079
      %v1431 = vpop.f32.mrf.mxu0
      %v1432 = vadd.f32 %v1383, %v1431
      %v1433 = vpop.f32.mrf.mxu0
      %v1434 = vadd.f32 %v1385, %v1433
      %1435 = vmatmul.bf16.gmra.mxu0 %v1082
      %v1436 = vpop.f32.mrf.mxu0
      %v1437 = vadd.f32 %v1388, %v1436
      %v1438 = vpop.f32.mrf.mxu0
      %v1439 = vadd.f32 %v1390, %v1438
      %1440 = vmatmul.bf16.gmra.mxu0 %v1085
      %v1441 = vpop.f32.mrf.mxu0
      %v1442 = vadd.f32 %v1393, %v1441
      %v1443 = vpop.f32.mrf.mxu0
      %v1444 = vadd.f32 %v1395, %v1443
      %1445 = vmatmul.bf16.gmra.mxu0 %v1088
      %v1446 = vpop.f32.mrf.mxu0
      %v1447 = vadd.f32 %v1398, %v1446
      %v1448 = vpop.f32.mrf.mxu0
      %v1449 = vadd.f32 %v1400, %v1448
      %1450 = vmatmul.bf16.gmra.mxu0 %v1091
      %v1451 = vpop.f32.mrf.mxu0
      %v1452 = vadd.f32 %v1403, %v1451
      %v1453 = vpop.f32.mrf.mxu0
      %v1454 = vadd.f32 %v1405, %v1453
      %1455 = vdwg.mxu0
      %v1456 = vadd.f32 %v1100, %v1417
      %v1457 = vadd.f32 %v1101, %v1419
      %v1458 = vadd.f32 %v1102, %v1422
      %v1459 = vadd.f32 %v1103, %v1424
      %v1460 = vadd.f32 %v1104, %v1427
      %v1461 = vadd.f32 %v1105, %v1429
      %v1462 = vadd.f32 %v1106, %v1432
      %v1463 = vadd.f32 %v1107, %v1434
      %v1464 = vadd.f32 %v1108, %v1437
      %v1465 = vadd.f32 %v1109, %v1439
      %v1466 = vadd.f32 %v1110, %v1442
      %v1467 = vadd.f32 %v1111, %v1444
      %v1468 = vadd.f32 %v1112, %v1447
      %v1469 = vadd.f32 %v1113, %v1449
      %v1470 = vadd.f32 %v1114, %v1452
      %v1471 = vadd.f32 %v1115, %v1454
      %1472 = vst [vmem:[#allocation2] sm:$0xff] %v1456
      %1473 = vst [vmem:[#allocation2 + $0x8] sm:$0xff] %v1457
      %1474 = vst [vmem:[#allocation2 + $0x10] sm:$0xff] %v1458
      %1475 = vst [vmem:[#allocation2 + $0x18] sm:$0xff] %v1459
      %1476 = vst [vmem:[#allocation2 + $0x20] sm:$0xff] %v1460
      %1477 = vst [vmem:[#allocation2 + $0x28] sm:$0xff] %v1461
      %1478 = vst [vmem:[#allocation2 + $0x30] sm:$0xff] %v1462
      %1479 = vst [vmem:[#allocation2 + $0x38] sm:$0xff] %v1463
      %1480 = vst [vmem:[#allocation2 + $0x40] sm:$0xff] %v1464
      %1481 = vst [vmem:[#allocation2 + $0x48] sm:$0xff] %v1465
      %1482 = vst [vmem:[#allocation2 + $0x50] sm:$0xff] %v1466
      %1483 = vst [vmem:[#allocation2 + $0x58] sm:$0xff] %v1467
      %1484 = vst [vmem:[#allocation2 + $0x60] sm:$0xff] %v1468
      %1485 = vst [vmem:[#allocation2 + $0x68] sm:$0xff] %v1469
      %1486 = vst [vmem:[#allocation2 + $0x70] sm:$0xff] %v1470
      %1487 = vst [vmem:[#allocation2 + $0x78] sm:$0xff] %v1471
      %s1488 = sadd.s32 %s223, 2
      %s1489 = smul.u32 %s1488, 3
      %s1490 = smul.addr %s1489, 4
      %s1491 = scalar_lea.vmem %s211, %s1490
      %v1492 = vld [vmem:[%s1491] sm:$0xf]
      %v1493 = vld [vmem:[%s1491 + $0x4] sm:$0xf]
      %v1494 = vld [vmem:[%s1491 + $0x8] sm:$0x1]
      %v1495 = vld [vmem:[%s1491 + $0xc] sm:$0xf]
      %v1496 = vld [vmem:[%s1491 + $0x10] sm:$0xf]
      %v1497 = vld [vmem:[%s1491 + $0x14] sm:$0x1]
      %v1498 = vld [vmem:[%s1491 + $0x18] sm:$0xf]
      %v1499 = vld [vmem:[%s1491 + $0x1c] sm:$0xf]
      %v1500 = vld [vmem:[%s1491 + $0x20] sm:$0x1]
      %v1501 = vld [vmem:[%s1491 + $0x24] sm:$0xf]
      %v1502 = vld [vmem:[%s1491 + $0x28] sm:$0xf]
      %v1503 = vld [vmem:[%s1491 + $0x2c] sm:$0x1]
      %v1504 = vld [vmem:[%s1491 + $0x30] sm:$0xf]
      %v1505 = vld [vmem:[%s1491 + $0x34] sm:$0xf]
      %v1506 = vld [vmem:[%s1491 + $0x38] sm:$0x1]
      %v1507 = vld [vmem:[%s1491 + $0x3c] sm:$0xf]
      %v1508 = vld [vmem:[%s1491 + $0x40] sm:$0xf]
      %v1509 = vld [vmem:[%s1491 + $0x44] sm:$0x1]
      %v1510 = vld [vmem:[%s1491 + $0x48] sm:$0xf]
      %v1511 = vld [vmem:[%s1491 + $0x4c] sm:$0xf]
      %v1512 = vld [vmem:[%s1491 + $0x50] sm:$0x1]
      %v1513 = vld [vmem:[%s1491 + $0x54] sm:$0xf]
      %v1514 = vld [vmem:[%s1491 + $0x58] sm:$0xf]
      %v1515 = vld [vmem:[%s1491 + $0x5c] sm:$0x1]
      %v1532 = vunpack.c.l.b16 %v1492
      %v1533 = vunpack.c.l.b16 %v1493
      %v1534 = vunpack.c.l.b16 %v1495
      %v1535 = vunpack.c.l.b16 %v1496
      %v1536 = vunpack.c.l.b16 %v1498
      %v1537 = vunpack.c.l.b16 %v1499
      %v1538 = vunpack.c.l.b16 %v1501
      %v1539 = vunpack.c.l.b16 %v1502
      %v1540 = vunpack.c.l.b16 %v1504
      %v1541 = vunpack.c.l.b16 %v1505
      %v1542 = vunpack.c.l.b16 %v1507
      %v1543 = vunpack.c.l.b16 %v1508
      %v1544 = vunpack.c.l.b16 %v1510
      %v1545 = vunpack.c.l.b16 %v1511
      %v1546 = vunpack.c.l.b16 %v1513
      %v1547 = vunpack.c.l.b16 %v1514
      %v1548 = vpack.c.b16 %v1533, %v1532
      %v1549 = vpack.c.b16 %v1535, %v1534
      %v1550 = vpack.c.b16 %v1537, %v1536
      %v1551 = vpack.c.b16 %v1539, %v1538
      %v1552 = vpack.c.b16 %v1541, %v1540
      %v1553 = vpack.c.b16 %v1543, %v1542
      %v1554 = vpack.c.b16 %v1545, %v1544
      %v1555 = vpack.c.b16 %v1547, %v1546
      %v1572 = vunpack.c.l.b16 %v1494
      %v1573 = vunpack.c.l.b16 %v1497
      %v1574 = vunpack.c.l.b16 %v1500
      %v1575 = vunpack.c.l.b16 %v1503
      %v1576 = vunpack.c.l.b16 %v1506
      %v1577 = vunpack.c.l.b16 %v1509
      %v1578 = vunpack.c.l.b16 %v1512
      %v1579 = vunpack.c.l.b16 %v1515
      %v1580 = vpack.c.b16 %v1572, %v1572
      %v1581 = vpack.c.b16 %v1573, %v1573
      %v1582 = vpack.c.b16 %v1574, %v1574
      %v1583 = vpack.c.b16 %v1575, %v1575
      %v1584 = vpack.c.b16 %v1576, %v1576
      %v1585 = vpack.c.b16 %v1577, %v1577
      %v1586 = vpack.c.b16 %v1578, %v1578
      %v1587 = vpack.c.b16 %v1579, %v1579
      %v1589 = vshrl.u32 %v1548, 16
      %v1591 = vshll.u32 %v1548, 16
      %v1593 = vrot.slane %v1591, 1
      %v1594 = vor.u32 %v1589, %v1593
      %v1596 = vshll.u32 %v1580, 16
      %v1598 = vrot.slane %v1596, 1
      %v1599 = vsel %vm339, %v1594, %v1598
      %v1601 = vshrl.u32 %v1549, 16
      %v1603 = vshll.u32 %v1549, 16
      %v1605 = vrot.slane %v1603, 1
      %v1606 = vor.u32 %v1601, %v1605
      %v1608 = vshll.u32 %v1581, 16
      %v1610 = vrot.slane %v1608, 1
      %v1611 = vsel %vm339, %v1606, %v1610
      %v1613 = vshrl.u32 %v1550, 16
      %v1615 = vshll.u32 %v1550, 16
      %v1617 = vrot.slane %v1615, 1
      %v1618 = vor.u32 %v1613, %v1617
      %v1620 = vshll.u32 %v1582, 16
      %v1622 = vrot.slane %v1620, 1
      %v1623 = vsel %vm339, %v1618, %v1622
      %v1625 = vshrl.u32 %v1551, 16
      %v1627 = vshll.u32 %v1551, 16
      %v1629 = vrot.slane %v1627, 1
      %v1630 = vor.u32 %v1625, %v1629
      %v1632 = vshll.u32 %v1583, 16
      %v1634 = vrot.slane %v1632, 1
      %v1635 = vsel %vm339, %v1630, %v1634
      %v1637 = vshrl.u32 %v1552, 16
      %v1639 = vshll.u32 %v1552, 16
      %v1641 = vrot.slane %v1639, 1
      %v1642 = vor.u32 %v1637, %v1641
      %v1644 = vshll.u32 %v1584, 16
      %v1646 = vrot.slane %v1644, 1
      %v1647 = vsel %vm339, %v1642, %v1646
      %v1649 = vshrl.u32 %v1553, 16
      %v1651 = vshll.u32 %v1553, 16
      %v1653 = vrot.slane %v1651, 1
      %v1654 = vor.u32 %v1649, %v1653
      %v1656 = vshll.u32 %v1585, 16
      %v1658 = vrot.slane %v1656, 1
      %v1659 = vsel %vm339, %v1654, %v1658
      %v1661 = vshrl.u32 %v1554, 16
      %v1663 = vshll.u32 %v1554, 16
      %v1665 = vrot.slane %v1663, 1
      %v1666 = vor.u32 %v1661, %v1665
      %v1668 = vshll.u32 %v1586, 16
      %v1670 = vrot.slane %v1668, 1
      %v1671 = vsel %vm339, %v1666, %v1670
      %v1673 = vshrl.u32 %v1555, 16
      %v1675 = vshll.u32 %v1555, 16
      %v1677 = vrot.slane %v1675, 1
      %v1678 = vor.u32 %v1673, %v1677
      %v1680 = vshll.u32 %v1587, 16
      %v1682 = vrot.slane %v1680, 1
      %v1683 = vsel %vm339, %v1678, %v1682
      %v1692 = vrot.slane %v1548, 1
      %v1693 = vrot.slane %v1580, 1
      %v1694 = vsel %vm444, %v1692, %v1693
      %v1695 = vrot.slane %v1549, 1
      %v1696 = vrot.slane %v1581, 1
      %v1697 = vsel %vm444, %v1695, %v1696
      %v1698 = vrot.slane %v1550, 1
      %v1699 = vrot.slane %v1582, 1
      %v1700 = vsel %vm444, %v1698, %v1699
      %v1701 = vrot.slane %v1551, 1
      %v1702 = vrot.slane %v1583, 1
      %v1703 = vsel %vm444, %v1701, %v1702
      %v1704 = vrot.slane %v1552, 1
      %v1705 = vrot.slane %v1584, 1
      %v1706 = vsel %vm444, %v1704, %v1705
      %v1707 = vrot.slane %v1553, 1
      %v1708 = vrot.slane %v1585, 1
      %v1709 = vsel %vm444, %v1707, %v1708
      %v1710 = vrot.slane %v1554, 1
      %v1711 = vrot.slane %v1586, 1
      %v1712 = vsel %vm444, %v1710, %v1711
      %v1713 = vrot.slane %v1555, 1
      %v1714 = vrot.slane %v1587, 1
      %v1715 = vsel %vm444, %v1713, %v1714
      %v1724 = vld [vmem:[#allocation2] sm:$0xff]
      %v1725 = vld [vmem:[#allocation2 + $0x8] sm:$0xff]
      %v1726 = vld [vmem:[#allocation2 + $0x10] sm:$0xff]
      %v1727 = vld [vmem:[#allocation2 + $0x18] sm:$0xff]
      %v1728 = vld [vmem:[#allocation2 + $0x20] sm:$0xff]
      %v1729 = vld [vmem:[#allocation2 + $0x28] sm:$0xff]
      %v1730 = vld [vmem:[#allocation2 + $0x30] sm:$0xff]
      %v1731 = vld [vmem:[#allocation2 + $0x38] sm:$0xff]
      %v1732 = vld [vmem:[#allocation2 + $0x40] sm:$0xff]
      %v1733 = vld [vmem:[#allocation2 + $0x48] sm:$0xff]
      %v1734 = vld [vmem:[#allocation2 + $0x50] sm:$0xff]
      %v1735 = vld [vmem:[#allocation2 + $0x58] sm:$0xff]
      %v1736 = vld [vmem:[#allocation2 + $0x60] sm:$0xff]
      %v1737 = vld [vmem:[#allocation2 + $0x68] sm:$0xff]
      %v1738 = vld [vmem:[#allocation2 + $0x70] sm:$0xff]
      %v1739 = vld [vmem:[#allocation2 + $0x78] sm:$0xff]
      %s1740 = scalar_lea.vmem %s1, 384
      %v1741 = vld [vmem:[%s1740] sm:$0xf]
      %v1742 = vld [vmem:[%s1740 + $0x4] sm:$0xf]
      %v1743 = vld [vmem:[%s1740 + $0x8] sm:$0xf]
      %v1744 = vld [vmem:[%s1740 + $0xc] sm:$0xf]
      %v1745 = vld [vmem:[%s1740 + $0x10] sm:$0xf]
      %v1746 = vld [vmem:[%s1740 + $0x14] sm:$0xf]
      %v1747 = vld [vmem:[%s1740 + $0x18] sm:$0xf]
      %v1748 = vld [vmem:[%s1740 + $0x1c] sm:$0xf]
      %v1749 = vld [vmem:[%s1740 + $0x20] sm:$0xf]
      %v1750 = vld [vmem:[%s1740 + $0x24] sm:$0xf]
      %v1751 = vld [vmem:[%s1740 + $0x28] sm:$0xf]
      %v1752 = vld [vmem:[%s1740 + $0x2c] sm:$0xf]
      %v1753 = vld [vmem:[%s1740 + $0x30] sm:$0xf]
      %v1754 = vld [vmem:[%s1740 + $0x34] sm:$0xf]
      %v1755 = vld [vmem:[%s1740 + $0x38] sm:$0xf]
      %v1756 = vld [vmem:[%s1740 + $0x3c] sm:$0xf]
      %v1757 = vld [vmem:[%s1740 + $0x40] sm:$0xf]
      %v1758 = vld [vmem:[%s1740 + $0x44] sm:$0xf]
      %v1759 = vld [vmem:[%s1740 + $0x48] sm:$0xf]
      %v1760 = vld [vmem:[%s1740 + $0x4c] sm:$0xf]
      %v1761 = vld [vmem:[%s1740 + $0x50] sm:$0xf]
      %v1762 = vld [vmem:[%s1740 + $0x54] sm:$0xf]
      %v1763 = vld [vmem:[%s1740 + $0x58] sm:$0xf]
      %v1764 = vld [vmem:[%s1740 + $0x5c] sm:$0xf]
      %v1765 = vld [vmem:[%s1740 + $0x60] sm:$0xf]
      %v1766 = vld [vmem:[%s1740 + $0x64] sm:$0xf]
      %v1767 = vld [vmem:[%s1740 + $0x68] sm:$0xf]
      %v1768 = vld [vmem:[%s1740 + $0x6c] sm:$0xf]
      %v1769 = vld [vmem:[%s1740 + $0x70] sm:$0xf]
      %v1770 = vld [vmem:[%s1740 + $0x74] sm:$0xf]
      %v1771 = vld [vmem:[%s1740 + $0x78] sm:$0xf]
      %v1772 = vld [vmem:[%s1740 + $0x7c] sm:$0xf]
      %v1773 = vld [vmem:[%s1740 + $0x80] sm:$0xf]
      %v1774 = vld [vmem:[%s1740 + $0x84] sm:$0xf]
      %v1775 = vld [vmem:[%s1740 + $0x88] sm:$0xf]
      %v1776 = vld [vmem:[%s1740 + $0x8c] sm:$0xf]
      %v1777 = vld [vmem:[%s1740 + $0x90] sm:$0xf]
      %v1778 = vld [vmem:[%s1740 + $0x94] sm:$0xf]
      %v1779 = vld [vmem:[%s1740 + $0x98] sm:$0xf]
      %v1780 = vld [vmem:[%s1740 + $0x9c] sm:$0xf]
      %v1781 = vld [vmem:[%s1740 + $0xa0] sm:$0xf]
      %v1782 = vld [vmem:[%s1740 + $0xa4] sm:$0xf]
      %v1783 = vld [vmem:[%s1740 + $0xa8] sm:$0xf]
      %v1784 = vld [vmem:[%s1740 + $0xac] sm:$0xf]
      %v1785 = vld [vmem:[%s1740 + $0xb0] sm:$0xf]
      %v1786 = vld [vmem:[%s1740 + $0xb4] sm:$0xf]
      %v1787 = vld [vmem:[%s1740 + $0xb8] sm:$0xf]
      %v1788 = vld [vmem:[%s1740 + $0xbc] sm:$0xf]
      %v1837 = vunpack.c.l.b16 %v1741
      %v1838 = vunpack.c.l.b16 %v1742
      %v1839 = vunpack.c.l.b16 %v1743
      %v1840 = vunpack.c.l.b16 %v1744
      %v1841 = vunpack.c.l.b16 %v1745
      %v1842 = vunpack.c.l.b16 %v1746
      %v1843 = vunpack.c.l.b16 %v1747
      %v1844 = vunpack.c.l.b16 %v1748
      %v1845 = vunpack.c.l.b16 %v1749
      %v1846 = vunpack.c.l.b16 %v1750
      %v1847 = vunpack.c.l.b16 %v1751
      %v1848 = vunpack.c.l.b16 %v1752
      %v1849 = vunpack.c.l.b16 %v1753
      %v1850 = vunpack.c.l.b16 %v1754
      %v1851 = vunpack.c.l.b16 %v1755
      %v1852 = vunpack.c.l.b16 %v1756
      %v1853 = vunpack.c.l.b16 %v1757
      %v1854 = vunpack.c.l.b16 %v1758
      %v1855 = vunpack.c.l.b16 %v1759
      %v1856 = vunpack.c.l.b16 %v1760
      %v1857 = vunpack.c.l.b16 %v1761
      %v1858 = vunpack.c.l.b16 %v1762
      %v1859 = vunpack.c.l.b16 %v1763
      %v1860 = vunpack.c.l.b16 %v1764
      %v1861 = vunpack.c.l.b16 %v1765
      %v1862 = vunpack.c.l.b16 %v1766
      %v1863 = vunpack.c.l.b16 %v1767
      %v1864 = vunpack.c.l.b16 %v1768
      %v1865 = vunpack.c.l.b16 %v1769
      %v1866 = vunpack.c.l.b16 %v1770
      %v1867 = vunpack.c.l.b16 %v1771
      %v1868 = vunpack.c.l.b16 %v1772
      %v1869 = vunpack.c.l.b16 %v1773
      %v1870 = vunpack.c.l.b16 %v1774
      %v1871 = vunpack.c.l.b16 %v1775
      %v1872 = vunpack.c.l.b16 %v1776
      %v1873 = vunpack.c.l.b16 %v1777
      %v1874 = vunpack.c.l.b16 %v1778
      %v1875 = vunpack.c.l.b16 %v1779
      %v1876 = vunpack.c.l.b16 %v1780
      %v1877 = vunpack.c.l.b16 %v1781
      %v1878 = vunpack.c.l.b16 %v1782
      %v1879 = vunpack.c.l.b16 %v1783
      %v1880 = vunpack.c.l.b16 %v1784
      %v1881 = vunpack.c.l.b16 %v1785
      %v1882 = vunpack.c.l.b16 %v1786
      %v1883 = vunpack.c.l.b16 %v1787
      %v1884 = vunpack.c.l.b16 %v1788
      %v1885 = vpack.c.b16 %v1838, %v1837
      %v1886 = vpack.c.b16 %v1840, %v1839
      %v1887 = vpack.c.b16 %v1842, %v1841
      %v1888 = vpack.c.b16 %v1844, %v1843
      %v1889 = vpack.c.b16 %v1846, %v1845
      %v1890 = vpack.c.b16 %v1848, %v1847
      %v1891 = vpack.c.b16 %v1850, %v1849
      %v1892 = vpack.c.b16 %v1852, %v1851
      %v1893 = vpack.c.b16 %v1854, %v1853
      %v1894 = vpack.c.b16 %v1856, %v1855
      %v1895 = vpack.c.b16 %v1858, %v1857
      %v1896 = vpack.c.b16 %v1860, %v1859
      %v1897 = vpack.c.b16 %v1862, %v1861
      %v1898 = vpack.c.b16 %v1864, %v1863
      %v1899 = vpack.c.b16 %v1866, %v1865
      %v1900 = vpack.c.b16 %v1868, %v1867
      %v1901 = vpack.c.b16 %v1870, %v1869
      %v1902 = vpack.c.b16 %v1872, %v1871
      %v1903 = vpack.c.b16 %v1874, %v1873
      %v1904 = vpack.c.b16 %v1876, %v1875
      %v1905 = vpack.c.b16 %v1878, %v1877
      %v1906 = vpack.c.b16 %v1880, %v1879
      %v1907 = vpack.c.b16 %v1882, %v1881
      %v1908 = vpack.c.b16 %v1884, %v1883
      %1933 = vmatpush.bf16.msra.mxu0 %v1892
      %1934 = vmatpush.bf16.msra.mxu0 %v1891
      %1935 = vmatpush.bf16.msra.mxu0 %v1890
      %1936 = vmatpush.bf16.msra.mxu0 %v1889
      %1937 = vmatpush.bf16.msra.mxu0 %v1888
      %1938 = vmatpush.bf16.msra.mxu0 %v1887
      %1939 = vmatpush.bf16.msra.mxu0 %v1886
      %1940 = vmatpush.bf16.msra.mxu0 %v1885
      %1941 = vmatmul.bf16.gmra.mxu0 %v1548
      %v1942 = vpop.f32.mrf.mxu0
      %v1943 = vadd.f32 0.0, %v1942
      %v1944 = vpop.f32.mrf.mxu0
      %v1945 = vadd.f32 0.0, %v1944
      %1946 = vmatmul.bf16.gmra.mxu0 %v1549
      %v1947 = vpop.f32.mrf.mxu0
      %v1948 = vadd.f32 0.0, %v1947
      %v1949 = vpop.f32.mrf.mxu0
      %v1950 = vadd.f32 0.0, %v1949
      %1951 = vmatmul.bf16.gmra.mxu0 %v1550
      %v1952 = vpop.f32.mrf.mxu0
      %v1953 = vadd.f32 0.0, %v1952
      %v1954 = vpop.f32.mrf.mxu0
      %v1955 = vadd.f32 0.0, %v1954
      %1956 = vmatmul.bf16.gmra.mxu0 %v1551
      %v1957 = vpop.f32.mrf.mxu0
      %v1958 = vadd.f32 0.0, %v1957
      %v1959 = vpop.f32.mrf.mxu0
      %v1960 = vadd.f32 0.0, %v1959
      %1961 = vmatmul.bf16.gmra.mxu0 %v1552
      %v1962 = vpop.f32.mrf.mxu0
      %v1963 = vadd.f32 0.0, %v1962
      %v1964 = vpop.f32.mrf.mxu0
      %v1965 = vadd.f32 0.0, %v1964
      %1966 = vmatmul.bf16.gmra.mxu0 %v1553
      %v1967 = vpop.f32.mrf.mxu0
      %v1968 = vadd.f32 0.0, %v1967
      %v1969 = vpop.f32.mrf.mxu0
      %v1970 = vadd.f32 0.0, %v1969
      %1971 = vmatmul.bf16.gmra.mxu0 %v1554
      %v1972 = vpop.f32.mrf.mxu0
      %v1973 = vadd.f32 0.0, %v1972
      %v1974 = vpop.f32.mrf.mxu0
      %v1975 = vadd.f32 0.0, %v1974
      %1976 = vmatmul.bf16.gmra.mxu0 %v1555
      %v1977 = vpop.f32.mrf.mxu0
      %v1978 = vadd.f32 0.0, %v1977
      %v1979 = vpop.f32.mrf.mxu0
      %v1980 = vadd.f32 0.0, %v1979
      %1981 = vdwg.mxu0
      %1982 = vmatpush.bf16.msra.mxu0 %v1900
      %1983 = vmatpush.bf16.msra.mxu0 %v1899
      %1984 = vmatpush.bf16.msra.mxu0 %v1898
      %1985 = vmatpush.bf16.msra.mxu0 %v1897
      %1986 = vmatpush.bf16.msra.mxu0 %v1896
      %1987 = vmatpush.bf16.msra.mxu0 %v1895
      %1988 = vmatpush.bf16.msra.mxu0 %v1894
      %1989 = vmatpush.bf16.msra.mxu0 %v1893
      %1990 = vmatmul.bf16.gmra.mxu0 %v1599
      %v1991 = vpop.f32.mrf.mxu0
      %v1992 = vadd.f32 %v1943, %v1991
      %v1993 = vpop.f32.mrf.mxu0
      %v1994 = vadd.f32 %v1945, %v1993
      %1995 = vmatmul.bf16.gmra.mxu0 %v1611
      %v1996 = vpop.f32.mrf.mxu0
      %v1997 = vadd.f32 %v1948, %v1996
      %v1998 = vpop.f32.mrf.mxu0
      %v1999 = vadd.f32 %v1950, %v1998
      %2000 = vmatmul.bf16.gmra.mxu0 %v1623
      %v2001 = vpop.f32.mrf.mxu0
      %v2002 = vadd.f32 %v1953, %v2001
      %v2003 = vpop.f32.mrf.mxu0
      %v2004 = vadd.f32 %v1955, %v2003
      %2005 = vmatmul.bf16.gmra.mxu0 %v1635
      %v2006 = vpop.f32.mrf.mxu0
      %v2007 = vadd.f32 %v1958, %v2006
      %v2008 = vpop.f32.mrf.mxu0
      %v2009 = vadd.f32 %v1960, %v2008
      %2010 = vmatmul.bf16.gmra.mxu0 %v1647
      %v2011 = vpop.f32.mrf.mxu0
      %v2012 = vadd.f32 %v1963, %v2011
      %v2013 = vpop.f32.mrf.mxu0
      %v2014 = vadd.f32 %v1965, %v2013
      %2015 = vmatmul.bf16.gmra.mxu0 %v1659
      %v2016 = vpop.f32.mrf.mxu0
      %v2017 = vadd.f32 %v1968, %v2016
      %v2018 = vpop.f32.mrf.mxu0
      %v2019 = vadd.f32 %v1970, %v2018
      %2020 = vmatmul.bf16.gmra.mxu0 %v1671
      %v2021 = vpop.f32.mrf.mxu0
      %v2022 = vadd.f32 %v1973, %v2021
      %v2023 = vpop.f32.mrf.mxu0
      %v2024 = vadd.f32 %v1975, %v2023
      %2025 = vmatmul.bf16.gmra.mxu0 %v1683
      %v2026 = vpop.f32.mrf.mxu0
      %v2027 = vadd.f32 %v1978, %v2026
      %v2028 = vpop.f32.mrf.mxu0
      %v2029 = vadd.f32 %v1980, %v2028
      %2030 = vdwg.mxu0
      %2031 = vmatpush.bf16.msra.mxu0 %v1908
      %2032 = vmatpush.bf16.msra.mxu0 %v1907
      %2033 = vmatpush.bf16.msra.mxu0 %v1906
      %2034 = vmatpush.bf16.msra.mxu0 %v1905
      %2035 = vmatpush.bf16.msra.mxu0 %v1904
      %2036 = vmatpush.bf16.msra.mxu0 %v1903
      %2037 = vmatpush.bf16.msra.mxu0 %v1902
      %2038 = vmatpush.bf16.msra.mxu0 %v1901
      %2039 = vmatmul.bf16.gmra.mxu0 %v1694
      %v2040 = vpop.f32.mrf.mxu0
      %v2041 = vadd.f32 %v1992, %v2040
      %v2042 = vpop.f32.mrf.mxu0
      %v2043 = vadd.f32 %v1994, %v2042
      %2044 = vmatmul.bf16.gmra.mxu0 %v1697
      %v2045 = vpop.f32.mrf.mxu0
      %v2046 = vadd.f32 %v1997, %v2045
      %v2047 = vpop.f32.mrf.mxu0
      %v2048 = vadd.f32 %v1999, %v2047
      %2049 = vmatmul.bf16.gmra.mxu0 %v1700
      %v2050 = vpop.f32.mrf.mxu0
      %v2051 = vadd.f32 %v2002, %v2050
      %v2052 = vpop.f32.mrf.mxu0
      %v2053 = vadd.f32 %v2004, %v2052
      %2054 = vmatmul.bf16.gmra.mxu0 %v1703
      %v2055 = vpop.f32.mrf.mxu0
      %v2056 = vadd.f32 %v2007, %v2055
      %v2057 = vpop.f32.mrf.mxu0
      %v2058 = vadd.f32 %v2009, %v2057
      %2059 = vmatmul.bf16.gmra.mxu0 %v1706
      %v2060 = vpop.f32.mrf.mxu0
      %v2061 = vadd.f32 %v2012, %v2060
      %v2062 = vpop.f32.mrf.mxu0
      %v2063 = vadd.f32 %v2014, %v2062
      %2064 = vmatmul.bf16.gmra.mxu0 %v1709
      %v2065 = vpop.f32.mrf.mxu0
      %v2066 = vadd.f32 %v2017, %v2065
      %v2067 = vpop.f32.mrf.mxu0
      %v2068 = vadd.f32 %v2019, %v2067
      %2069 = vmatmul.bf16.gmra.mxu0 %v1712
      %v2070 = vpop.f32.mrf.mxu0
      %v2071 = vadd.f32 %v2022, %v2070
      %v2072 = vpop.f32.mrf.mxu0
      %v2073 = vadd.f32 %v2024, %v2072
      %2074 = vmatmul.bf16.gmra.mxu0 %v1715
      %v2075 = vpop.f32.mrf.mxu0
      %v2076 = vadd.f32 %v2027, %v2075
      %v2077 = vpop.f32.mrf.mxu0
      %v2078 = vadd.f32 %v2029, %v2077
      %2079 = vdwg.mxu0
      %v2080 = vadd.f32 %v1724, %v2041
      %v2081 = vadd.f32 %v1725, %v2043
      %v2082 = vadd.f32 %v1726, %v2046
      %v2083 = vadd.f32 %v1727, %v2048
      %v2084 = vadd.f32 %v1728, %v2051
      %v2085 = vadd.f32 %v1729, %v2053
      %v2086 = vadd.f32 %v1730, %v2056
      %v2087 = vadd.f32 %v1731, %v2058
      %v2088 = vadd.f32 %v1732, %v2061
      %v2089 = vadd.f32 %v1733, %v2063
      %v2090 = vadd.f32 %v1734, %v2066
      %v2091 = vadd.f32 %v1735, %v2068
      %v2092 = vadd.f32 %v1736, %v2071
      %v2093 = vadd.f32 %v1737, %v2073
      %v2094 = vadd.f32 %v1738, %v2076
      %v2095 = vadd.f32 %v1739, %v2078
      %2096 = vst [vmem:[#allocation2] sm:$0xff] %v2080
      %2097 = vst [vmem:[#allocation2 + $0x8] sm:$0xff] %v2081
      %2098 = vst [vmem:[#allocation2 + $0x10] sm:$0xff] %v2082
      %2099 = vst [vmem:[#allocation2 + $0x18] sm:$0xff] %v2083
      %2100 = vst [vmem:[#allocation2 + $0x20] sm:$0xff] %v2084
      %2101 = vst [vmem:[#allocation2 + $0x28] sm:$0xff] %v2085
      %2102 = vst [vmem:[#allocation2 + $0x30] sm:$0xff] %v2086
      %2103 = vst [vmem:[#allocation2 + $0x38] sm:$0xff] %v2087
      %2104 = vst [vmem:[#allocation2 + $0x40] sm:$0xff] %v2088
      %2105 = vst [vmem:[#allocation2 + $0x48] sm:$0xff] %v2089
      %2106 = vst [vmem:[#allocation2 + $0x50] sm:$0xff] %v2090
      %2107 = vst [vmem:[#allocation2 + $0x58] sm:$0xff] %v2091
      %2108 = vst [vmem:[#allocation2 + $0x60] sm:$0xff] %v2092
      %2109 = vst [vmem:[#allocation2 + $0x68] sm:$0xff] %v2093
      %2110 = vst [vmem:[#allocation2 + $0x70] sm:$0xff] %v2094
      %2111 = vst [vmem:[#allocation2 + $0x78] sm:$0xff] %v2095
      %v2112 = vld [vmem:[#allocation2] sm:$0xff]
      %v2113 = vld [vmem:[#allocation2 + $0x8] sm:$0xff]
      %v2114 = vld [vmem:[#allocation2 + $0x10] sm:$0xff]
      %v2115 = vld [vmem:[#allocation2 + $0x18] sm:$0xff]
      %v2116 = vld [vmem:[#allocation2 + $0x20] sm:$0xff]
      %v2117 = vld [vmem:[#allocation2 + $0x28] sm:$0xff]
      %v2118 = vld [vmem:[#allocation2 + $0x30] sm:$0xff]
      %v2119 = vld [vmem:[#allocation2 + $0x38] sm:$0xff]
      %v2120 = vld [vmem:[#allocation2 + $0x40] sm:$0xff]
      %v2121 = vld [vmem:[#allocation2 + $0x48] sm:$0xff]
      %v2122 = vld [vmem:[#allocation2 + $0x50] sm:$0xff]
      %v2123 = vld [vmem:[#allocation2 + $0x58] sm:$0xff]
      %v2124 = vld [vmem:[#allocation2 + $0x60] sm:$0xff]
      %v2125 = vld [vmem:[#allocation2 + $0x68] sm:$0xff]
      %v2126 = vld [vmem:[#allocation2 + $0x70] sm:$0xff]
      %v2127 = vld [vmem:[#allocation2 + $0x78] sm:$0xff]
      %v2128 = vld [vmem:[%s2] sm:$0x1]
      %v2130 = vperm.slane %v2128, 0
      %v2132 = vmul.f32 %v2112, %v2130
      %v2133 = vmul.f32 %v2113, %v2130
      %v2134 = vmul.f32 %v2114, %v2130
      %v2135 = vmul.f32 %v2115, %v2130
      %v2136 = vmul.f32 %v2116, %v2130
      %v2137 = vmul.f32 %v2117, %v2130
      %v2138 = vmul.f32 %v2118, %v2130
      %v2139 = vmul.f32 %v2119, %v2130
      %v2140 = vmul.f32 %v2120, %v2130
      %v2141 = vmul.f32 %v2121, %v2130
      %v2142 = vmul.f32 %v2122, %v2130
      %v2143 = vmul.f32 %v2123, %v2130
      %v2144 = vmul.f32 %v2124, %v2130
      %v2145 = vmul.f32 %v2125, %v2130
      %v2146 = vmul.f32 %v2126, %v2130
      %v2147 = vmul.f32 %v2127, %v2130
      %v2148 = vld [vmem:[%s3] sm:$0x1]
      %v2150 = vperm.slane %v2148, 0
      %v2152 = vadd.f32 %v2132, %v2150
      %v2153 = vadd.f32 %v2133, %v2150
      %v2154 = vadd.f32 %v2134, %v2150
      %v2155 = vadd.f32 %v2135, %v2150
      %v2156 = vadd.f32 %v2136, %v2150
      %v2157 = vadd.f32 %v2137, %v2150
      %v2158 = vadd.f32 %v2138, %v2150
      %v2159 = vadd.f32 %v2139, %v2150
      %v2160 = vadd.f32 %v2140, %v2150
      %v2161 = vadd.f32 %v2141, %v2150
      %v2162 = vadd.f32 %v2142, %v2150
      %v2163 = vadd.f32 %v2143, %v2150
      %v2164 = vadd.f32 %v2144, %v2150
      %v2165 = vadd.f32 %v2145, %v2150
      %v2166 = vadd.f32 %v2146, %v2150
      %v2167 = vadd.f32 %v2147, %v2150
      %vm2168 = vcmp.gt.f32.partialorder %v2152, 0.0
      %vm2169 = vcmp.gt.f32.partialorder %v2153, 0.0
      %vm2170 = vcmp.gt.f32.partialorder %v2154, 0.0
      %vm2171 = vcmp.gt.f32.partialorder %v2155, 0.0
      %vm2172 = vcmp.gt.f32.partialorder %v2156, 0.0
      %vm2173 = vcmp.gt.f32.partialorder %v2157, 0.0
      %vm2174 = vcmp.gt.f32.partialorder %v2158, 0.0
      %vm2175 = vcmp.gt.f32.partialorder %v2159, 0.0
      %vm2176 = vcmp.gt.f32.partialorder %v2160, 0.0
      %vm2177 = vcmp.gt.f32.partialorder %v2161, 0.0
      %vm2178 = vcmp.gt.f32.partialorder %v2162, 0.0
      %vm2179 = vcmp.gt.f32.partialorder %v2163, 0.0
      %vm2180 = vcmp.gt.f32.partialorder %v2164, 0.0
      %vm2181 = vcmp.gt.f32.partialorder %v2165, 0.0
      %vm2182 = vcmp.gt.f32.partialorder %v2166, 0.0
      %vm2183 = vcmp.gt.f32.partialorder %v2167, 0.0
      %v2184 = vmul.f32 %v2152, 0.1
      %v2185 = vmul.f32 %v2153, 0.1
      %v2186 = vmul.f32 %v2154, 0.1
      %v2187 = vmul.f32 %v2155, 0.1
      %v2188 = vmul.f32 %v2156, 0.1
      %v2189 = vmul.f32 %v2157, 0.1
      %v2190 = vmul.f32 %v2158, 0.1
      %v2191 = vmul.f32 %v2159, 0.1
      %v2192 = vmul.f32 %v2160, 0.1
      %v2193 = vmul.f32 %v2161, 0.1
      %v2194 = vmul.f32 %v2162, 0.1
      %v2195 = vmul.f32 %v2163, 0.1
      %v2196 = vmul.f32 %v2164, 0.1
      %v2197 = vmul.f32 %v2165, 0.1
      %v2198 = vmul.f32 %v2166, 0.1
      %v2199 = vmul.f32 %v2167, 0.1
      %v2200 = vsel %vm2168, %v2152, %v2184
      %v2201 = vsel %vm2169, %v2153, %v2185
      %v2202 = vsel %vm2170, %v2154, %v2186
      %v2203 = vsel %vm2171, %v2155, %v2187
      %v2204 = vsel %vm2172, %v2156, %v2188
      %v2205 = vsel %vm2173, %v2157, %v2189
      %v2206 = vsel %vm2174, %v2158, %v2190
      %v2207 = vsel %vm2175, %v2159, %v2191
      %v2208 = vsel %vm2176, %v2160, %v2192
      %v2209 = vsel %vm2177, %v2161, %v2193
      %v2210 = vsel %vm2178, %v2162, %v2194
      %v2211 = vsel %vm2179, %v2163, %v2195
      %v2212 = vsel %vm2180, %v2164, %v2196
      %v2213 = vsel %vm2181, %v2165, %v2197
      %v2214 = vsel %vm2182, %v2166, %v2198
      %v2215 = vsel %vm2183, %v2167, %v2199
      %2216 = vst [vmem:[%s221] sm:$0xff] %v2200
      %2217 = vst [vmem:[%s221 + $0x8] sm:$0xff] %v2201
      %2218 = vst [vmem:[%s221 + $0x10] sm:$0xff] %v2202
      %2219 = vst [vmem:[%s221 + $0x18] sm:$0xff] %v2203
      %2220 = vst [vmem:[%s221 + $0x20] sm:$0xff] %v2204
      %2221 = vst [vmem:[%s221 + $0x28] sm:$0xff] %v2205
      %2222 = vst [vmem:[%s221 + $0x30] sm:$0xff] %v2206
      %2223 = vst [vmem:[%s221 + $0x38] sm:$0xff] %v2207
      %2224 = vst [vmem:[%s221 + $0x40] sm:$0xff] %v2208
      %2225 = vst [vmem:[%s221 + $0x48] sm:$0xff] %v2209
      %2226 = vst [vmem:[%s221 + $0x50] sm:$0xff] %v2210
      %2227 = vst [vmem:[%s221 + $0x58] sm:$0xff] %v2211
      %2228 = vst [vmem:[%s221 + $0x60] sm:$0xff] %v2212
      %2229 = vst [vmem:[%s221 + $0x68] sm:$0xff] %v2213
      %2230 = vst [vmem:[%s221 + $0x70] sm:$0xff] %v2214
      %2231 = vst [vmem:[%s221 + $0x78] sm:$0xff] %v2215
      %s2232 = smul.u32 8, %s20
      %p2233 = scmp.lt.s32.totalorder %s19, 1
      %s2234 = scalar_select %p2233, %s19, 1
      %p2235 = scmp.lt.s32.totalorder %s2232, 15
      %s2236 = scalar_select %p2235, %s2232, 15
      %s2237 = smul.addr %s2236, 2
      %s2238 = smul.addr %s2234, 32
      %s2239 = sadd.s32 %s2237, %s2238
      %s2240 = smul.addr %s2239, 8
      %s2241 = scalar_lea.vmem %s4, %s2240
      // Predicated region
      $region37: #{conv_block_forward.1} parent=35 // pred_check
        %p2242 = pneg %p136
      $region38: #{conv_block_forward.1} parent=35 // pred_check_branch
        %2244 = sbr.rel (%p2242) target = $region40
      $region39: #{conv_block_forward.1} parent=35 // pred_region
        %s2245 = smul.u32 8, %s20
      $region40: #{conv_block_forward.1} parent=35 // pred_fallthru
        _
    $region36: #{conv_block_forward.1} parent=5 // pred_fallthru
      _
    %p2246 = scmp.le.s32.totalorder 2, %s10
    // Predicated region
    $region41: #{conv_block_forward.1} parent=5 // pred_check
      %p2247 = pneg %p2246
    $region42: #{conv_block_forward.1} parent=5 // pred_check_branch
      %2249 = sbr.rel (%p2247) target = $region44
    $region43: #{conv_block_forward.1} parent=5 // pred_region
      %s2250 = ssub.s32 %s10, 2
      // Predicated region
      $region45: #{conv_block_forward.1} parent=43 // pred_check
        %p2251 = pneg %p142
      $region46: #{conv_block_forward.1} parent=43 // pred_check_branch
        %2253 = sbr.rel (%p2251) target = $region48
      $region47: #{conv_block_forward.1} parent=43 // pred_region
        %s2254 = smul.u32 8, %s22
        %p2255 = scmp.lt.s32.totalorder %s21, 1
        %s2256 = scalar_select %p2255, %s21, 1
        %p2257 = scmp.lt.s32.totalorder %s2254, 15
        %s2258 = scalar_select %p2257, %s2254, 15
        %s2259 = smul.addr %s2258, 2
        %s2260 = smul.addr %s2256, 32
        %s2261 = sadd.s32 %s2259, %s2260
        %s2262 = smul.addr %s2261, 8
        %s2263 = scalar_lea.vmem %s4, %s2262
      $region48: #{conv_block_forward.1} parent=43 // pred_fallthru
        _
    $region44: #{conv_block_forward.1} parent=5 // pred_fallthru
      _
  $region6: #{conv_block_forward.1} parent=0 // loop_footer
    %s14 = sadd.s32 1, %s10
  $region7: #{conv_block_forward.1} parent=0 // loop_footer_branch
    %9 = sbr.rel target = $region3
  $region8: #{conv_block_forward.1} parent=0 // loop_exit
    _

</llo_original>
